<compile_context>
chip_gen: v7x
topology: tpu7x:2x2x1
jax: 0.10.0
libtpu: 0.0.40
codegen_flags: <defaults>
</compile_context>

<pallas_src>
import functools

import jax
import jax.numpy as jnp
from jax.experimental import pallas as pl
from jax.experimental.pallas import tpu as pltpu


def _gru_recurrence_kernel(gi_ref, whh_ref, bhh_ref, y_ref, h_ref, h_scratch,
                           *, ts):
    """One chunk of `ts` GRU time steps per grid iteration.

    gi_ref : (TS, B, 3H)  precomputed x_t @ W_ih^T + b_ih for this chunk
    whh_ref: (H, 3H)      W_hh^T
    bhh_ref: (1, 3H)
    y_ref  : (TS, B, H)   per-chunk output block
    h_ref  : (B, H)       final hidden state (written on last grid step only)
    PyTorch gate order: r, z, n.
    """
    c = pl.program_id(0)
    H = h_scratch.shape[-1]

    @pl.when(c == 0)
    def _():
        h_scratch[...] = jnp.zeros_like(h_scratch)

    whh = whh_ref[...]          # (H, 3H) — loaded once per chunk
    bhh = bhh_ref[...]          # (1, 3H)

    h = h_scratch[...]          # (B, H) carry from previous chunk (or zeros)

    # Statically unrolled inner time loop (ts is a small Python int).
    for i in range(ts):
        gi = gi_ref[i]          # (B, 3H)
        gh = jnp.dot(h, whh, preferred_element_type=jnp.float32) + bhh
        r = jax.nn.sigmoid(gi[:, 0 * H:1 * H] + gh[:, 0 * H:1 * H])
        z = jax.nn.sigmoid(gi[:, 1 * H:2 * H] + gh[:, 1 * H:2 * H])
        n = jnp.tanh(gi[:, 2 * H:3 * H] + r * gh[:, 2 * H:3 * H])
        h = (1.0 - z) * n + z * h
        y_ref[i] = h.astype(y_ref.dtype)

    h_scratch[...] = h

    @pl.when(c == pl.num_programs(0) - 1)
    def _():
        h_ref[...] = h.astype(h_ref.dtype)


def gru_layer(x, w_ih, w_hh, b_ih, b_hh, *, max_time_chunk=16):
    """Single unidirectional GRU layer.

    x:    (T, B, I) time-major
    w_ih: (3H, I), w_hh: (3H, H), b_ih/b_hh: (3H,)   (PyTorch parameter shapes)
    returns y: (T, B, H), h_n: (B, H)
    """
    T, B, I = x.shape
    H3 = w_ih.shape[0]
    H = H3 // 3

    x = x.astype(jnp.float32)
    w_ih = w_ih.astype(jnp.float32)
    whh_t = jnp.transpose(w_hh).astype(jnp.float32)      # (H, 3H)
    bih = b_ih.astype(jnp.float32)
    bhh = b_hh.reshape(1, H3).astype(jnp.float32)        # (1, 3H)

    # --- Hoisted input projection over ALL timesteps: one MXU-friendly matmul.
    gi = (x.reshape(T * B, I) @ jnp.transpose(w_ih) + bih).reshape(T, B, H3)

    # --- Pad batch up to the f32 sublane minimum (8).
    B_pad = max(8, ((B + 7) // 8) * 8)
    if B_pad != B:
        gi = jnp.pad(gi, ((0, 0), (0, B_pad - B), (0, 0)))

    # --- Time chunk: largest divisor of T not exceeding max_time_chunk.
    ts = max(d for d in range(1, min(T, max_time_chunk) + 1) if T % d == 0)
    grid = (T // ts,)

    kernel = functools.partial(_gru_recurrence_kernel, ts=ts)

    y, h_n = pl.pallas_call(
        kernel,
        out_shape=(
            jax.ShapeDtypeStruct((T, B_pad, H), jnp.float32),
            jax.ShapeDtypeStruct((B_pad, H), jnp.float32),
        ),
        grid_spec=pltpu.PrefetchScalarGridSpec(
            num_scalar_prefetch=0,
            grid=grid,
            in_specs=[
                pl.BlockSpec((ts, B_pad, H3), lambda c: (c, 0, 0)),  # gi chunk
                pl.BlockSpec((H, H3), lambda c: (0, 0)),             # W_hh^T
                pl.BlockSpec((1, H3), lambda c: (0, 0)),             # b_hh
            ],
            out_specs=[
                pl.BlockSpec((ts, B_pad, H), lambda c: (c, 0, 0)),   # y chunk
                pl.BlockSpec((B_pad, H), lambda c: (0, 0)),          # final h
            ],
            scratch_shapes=[pltpu.VMEM((B_pad, H), jnp.float32)],
        ),
        compiler_params=pltpu.CompilerParams(
            dimension_semantics=("arbitrary",)),
    )(gi, whh_t, bhh)

    return y[:, :B, :], h_n[:B, :]


def init_linear_rnn_params(key, input_sizes, hidden_sizes):
    """Deterministic parameter init matching PyTorch GRU shapes
    (uniform(-1/sqrt(H), 1/sqrt(H)))."""
    params = []
    for (in_sz, hid_sz) in zip(input_sizes, hidden_sizes):
        key, k1, k2, k3, k4 = jax.random.split(key, 5)
        bound = 1.0 / jnp.sqrt(jnp.float32(hid_sz))
        w_ih = jax.random.uniform(k1, (3 * hid_sz, in_sz), jnp.float32, -bound, bound)
        w_hh = jax.random.uniform(k2, (3 * hid_sz, hid_sz), jnp.float32, -bound, bound)
        b_ih = jax.random.uniform(k3, (3 * hid_sz,), jnp.float32, -bound, bound)
        b_hh = jax.random.uniform(k4, (3 * hid_sz,), jnp.float32, -bound, bound)
        params.append((w_ih, w_hh, b_ih, b_hh))
    return params


@jax.jit
def linear_rnn_base_forward(x, params_flat):
    """Forward pass of LinearRnnBase (x_len=None path).

    x: (T, B, input_sizes[0]) time-major.
    Returns (y, h) where y: (T, B, hidden_sizes[-1]),
    h: (1, B, hidden_sizes[-1])  (num_layers*num_directions of last RNNBase = 1).
    """
    # TODO(synk): pack_padded_sequence / pad_packed_sequence (x_len path) has no
    # clean Pallas equivalent; only the x_len=None path is implemented.
    h_n = None
    for (w_ih, w_hh, b_ih, b_hh) in params_flat:
        x, h_n = gru_layer(x, w_ih, w_hh, b_ih, b_hh)
    return x, h_n[None, :, :]


def _reference_gru_stack(x, params):
    """Pure-JAX reference for correctness check."""
    h_last = None
    for (w_ih, w_hh, b_ih, b_hh) in params:
        T, B, _ = x.shape
        H = w_hh.shape[1]

        def step(h, x_t, w_ih=w_ih, w_hh=w_hh, b_ih=b_ih, b_hh=b_hh, H=H):
            gi = x_t @ w_ih.T + b_ih
            gh = h @ w_hh.T + b_hh
            r = jax.nn.sigmoid(gi[:, :H] + gh[:, :H])
            z = jax.nn.sigmoid(gi[:, H:2 * H] + gh[:, H:2 * H])
            n = jnp.tanh(gi[:, 2 * H:] + r * gh[:, 2 * H:])
            h_new = (1.0 - z) * n + z * h
            return h_new, h_new

        h0 = jnp.zeros((B, H), jnp.float32)
        h_last, ys = jax.lax.scan(step, h0, x)
        x = ys
    return x, h_last[None]


if __name__ == "__main__":
    key = jax.random.PRNGKey(0)

    # Small shapes implied by the module: 2 stacked GRU layers.
    T, B = 8, 2
    input_sizes = [16, 32]
    hidden_sizes = [32, 32]

    key, xkey = jax.random.split(key)
    x = jax.random.normal(xkey, (T, B, input_sizes[0]), jnp.float32)

    params = init_linear_rnn_params(key, input_sizes, hidden_sizes)

    y, h = linear_rnn_base_forward(x, params)
    y = jax.block_until_ready(y)
    h = jax.block_until_ready(h)

    y_ref, h_ref = _reference_gru_stack(x, params)
    assert y.shape == (T, B, hidden_sizes[-1])
    assert h.shape == (1, B, hidden_sizes[-1])
    assert jnp.allclose(y, y_ref, atol=1e-5, rtol=1e-5)
    assert jnp.allclose(h, h_ref, atol=1e-5, rtol=1e-5)

    print("KERNEL_OK")
</pallas_src>

<mosaic_0001>
module attributes {stable_mosaic.version = 11 : i64} {
  func.func @_gru_recurrence_kernel(%arg0: i32, %arg1: memref<8x8x96xf32, #tpu.memory_space<vmem>>, %arg2: memref<32x96xf32, #tpu.memory_space<vmem>>, %arg3: memref<1x96xf32, #tpu.memory_space<vmem>>, %arg4: memref<8x8x32xf32, #tpu.memory_space<vmem>>, %arg5: memref<8x32xf32, #tpu.memory_space<vmem>>, %arg6: memref<8x32xf32, #tpu.memory_space<vmem>>) attributes {dimension_semantics = [#tpu.dimension_semantics<arbitrary>], iteration_bounds = array<i64: 1>, scalar_prefetch = 0 : i64, scratch_operands = 1 : i64, tpu.core_type = #tpu.core_type<tc>, window_params = [{transform_indices = @transform_0, window_bounds = array<i64: 8, 8, 96>}, {pipeline_mode = #tpu.pipeline_mode<synchronous>, transform_indices = @transform_1, window_bounds = array<i64: 32, 96>}, {pipeline_mode = #tpu.pipeline_mode<synchronous>, transform_indices = @transform_2, window_bounds = array<i64: 1, 96>}, {transform_indices = @transform_3, window_bounds = array<i64: 8, 8, 32>}, {pipeline_mode = #tpu.pipeline_mode<synchronous>, transform_indices = @transform_4, window_bounds = array<i64: 8, 32>}]} {
    %c0_i32 = arith.constant 0 : i32
    %0 = arith.cmpi eq, %arg0, %c0_i32 : i32
    %1 = arith.extui %0 : i1 to i32
    %c0_i32_0 = arith.constant 0 : i32
    %2 = arith.cmpi ne, %1, %c0_i32_0 : i32
    scf.if %2 {
      %cst_82 = arith.constant 0.000000e+00 : f32
      %282 = vector.broadcast %cst_82 : f32 to vector<8x32xf32>
      %c0_83 = arith.constant 0 : index
      %c0_84 = arith.constant 0 : index
      %283 = vector.load %arg6[%c0_83, %c0_84] : memref<8x32xf32, #tpu.memory_space<vmem>>, vector<8x32xf32>
      tpu.vector_store %arg6[%c0_83, %c0_84], %282 {strides = array<i32>} : memref<8x32xf32, #tpu.memory_space<vmem>>, vector<8x32xf32>,
    } else {
    }
    %c0 = arith.constant 0 : index
    %c0_1 = arith.constant 0 : index
    %3 = vector.load %arg2[%c0, %c0_1] : memref<32x96xf32, #tpu.memory_space<vmem>>, vector<32x96xf32>
    %c0_2 = arith.constant 0 : index
    %c0_3 = arith.constant 0 : index
    %4 = vector.load %arg3[%c0_2, %c0_3] : memref<1x96xf32, #tpu.memory_space<vmem>>, vector<1x96xf32>
    %c0_4 = arith.constant 0 : index
    %c0_5 = arith.constant 0 : index
    %5 = vector.load %arg6[%c0_4, %c0_5] : memref<8x32xf32, #tpu.memory_space<vmem>>, vector<8x32xf32>
    %c0_6 = arith.constant 0 : index
    %c0_7 = arith.constant 0 : index
    %c0_8 = arith.constant 0 : index
    %6 = vector.load %arg1[%c0_6, %c0_7, %c0_8] : memref<8x8x96xf32, #tpu.memory_space<vmem>>, vector<1x8x96xf32>
    %7 = vector.shape_cast %6 : vector<1x8x96xf32> to vector<8x96xf32>
    %cst = arith.constant dense<0.000000e+00> : vector<8x96xf32>
    %8 = tpu.matmul %5, %3, %cst {dimension_numbers = #tpu.dot_dimension_numbers<[1], [0], [0], [1], [0, 0, 1, 1], [], []>} : vector<8x32xf32>, vector<32x96xf32>, vector<8x96xf32> -> vector<8x96xf32>
    %9 = vector.broadcast %4 : vector<1x96xf32> to vector<8x96xf32>
    %10 = arith.addf %8, %9 : vector<8x96xf32>
    %11 = vector.extract_strided_slice %7 {offsets = [0, 0], sizes = [8, 32], strides = [1, 1]} : vector<8x96xf32> to vector<8x32xf32>
    %12 = vector.extract_strided_slice %10 {offsets = [0, 0], sizes = [8, 32], strides = [1, 1]} : vector<8x96xf32> to vector<8x32xf32>
    %13 = arith.addf %11, %12 : vector<8x32xf32>
    %14 = arith.negf %13 : vector<8x32xf32>
    %15 = math.exp %14 : vector<8x32xf32>
    %cst_9 = arith.constant 1.000000e+00 : f32
    %16 = vector.broadcast %cst_9 : f32 to vector<8x32xf32>
    %17 = arith.addf %16, %15 : vector<8x32xf32>
    %18 = arith.divf %16, %17 : vector<8x32xf32>
    %19 = vector.extract_strided_slice %7 {offsets = [0, 32], sizes = [8, 32], strides = [1, 1]} : vector<8x96xf32> to vector<8x32xf32>
    %20 = vector.extract_strided_slice %10 {offsets = [0, 32], sizes = [8, 32], strides = [1, 1]} : vector<8x96xf32> to vector<8x32xf32>
    %21 = arith.addf %19, %20 : vector<8x32xf32>
    %22 = arith.negf %21 : vector<8x32xf32>
    %23 = math.exp %22 : vector<8x32xf32>
    %cst_10 = arith.constant 1.000000e+00 : f32
    %24 = vector.broadcast %cst_10 : f32 to vector<8x32xf32>
    %25 = arith.addf %24, %23 : vector<8x32xf32>
    %26 = arith.divf %24, %25 : vector<8x32xf32>
    %27 = vector.extract_strided_slice %7 {offsets = [0, 64], sizes = [8, 32], strides = [1, 1]} : vector<8x96xf32> to vector<8x32xf32>
    %28 = vector.extract_strided_slice %10 {offsets = [0, 64], sizes = [8, 32], strides = [1, 1]} : vector<8x96xf32> to vector<8x32xf32>
    %29 = arith.mulf %18, %28 : vector<8x32xf32>
    %30 = arith.addf %27, %29 : vector<8x32xf32>
    %31 = math.tanh %30 : vector<8x32xf32>
    %cst_11 = arith.constant 1.000000e+00 : f32
    %32 = vector.broadcast %cst_11 : f32 to vector<8x32xf32>
    %33 = arith.subf %32, %26 : vector<8x32xf32>
    %34 = arith.mulf %33, %31 : vector<8x32xf32>
    %35 = arith.mulf %26, %5 : vector<8x32xf32>
    %36 = arith.addf %34, %35 : vector<8x32xf32>
    %c0_12 = arith.constant 0 : index
    %c0_13 = arith.constant 0 : index
    %c0_14 = arith.constant 0 : index
    %37 = vector.load %arg4[%c0_12, %c0_13, %c0_14] : memref<8x8x32xf32, #tpu.memory_space<vmem>>, vector<1x8x32xf32>
    %38 = vector.shape_cast %37 : vector<1x8x32xf32> to vector<8x32xf32>
    %39 = vector.shape_cast %36 : vector<8x32xf32> to vector<1x8x32xf32>
    tpu.vector_store %arg4[%c0_12, %c0_13, %c0_14], %39 {strides = array<i32>} : memref<8x8x32xf32, #tpu.memory_space<vmem>>, vector<1x8x32xf32>,
    %c1 = arith.constant 1 : index
    %c0_15 = arith.constant 0 : index
    %c0_16 = arith.constant 0 : index
    %40 = vector.load %arg1[%c1, %c0_15, %c0_16] : memref<8x8x96xf32, #tpu.memory_space<vmem>>, vector<1x8x96xf32>
    %41 = vector.shape_cast %40 : vector<1x8x96xf32> to vector<8x96xf32>
    %cst_17 = arith.constant dense<0.000000e+00> : vector<8x96xf32>
    %42 = tpu.matmul %36, %3, %cst_17 {dimension_numbers = #tpu.dot_dimension_numbers<[1], [0], [0], [1], [0, 0, 1, 1], [], []>} : vector<8x32xf32>, vector<32x96xf32>, vector<8x96xf32> -> vector<8x96xf32>
    %43 = vector.broadcast %4 : vector<1x96xf32> to vector<8x96xf32>
    %44 = arith.addf %42, %43 : vector<8x96xf32>
    %45 = vector.extract_strided_slice %41 {offsets = [0, 0], sizes = [8, 32], strides = [1, 1]} : vector<8x96xf32> to vector<8x32xf32>
    %46 = vector.extract_strided_slice %44 {offsets = [0, 0], sizes = [8, 32], strides = [1, 1]} : vector<8x96xf32> to vector<8x32xf32>
    %47 = arith.addf %45, %46 : vector<8x32xf32>
    %48 = arith.negf %47 : vector<8x32xf32>
    %49 = math.exp %48 : vector<8x32xf32>
    %cst_18 = arith.constant 1.000000e+00 : f32
    %50 = vector.broadcast %cst_18 : f32 to vector<8x32xf32>
    %51 = arith.addf %50, %49 : vector<8x32xf32>
    %52 = arith.divf %50, %51 : vector<8x32xf32>
    %53 = vector.extract_strided_slice %41 {offsets = [0, 32], sizes = [8, 32], strides = [1, 1]} : vector<8x96xf32> to vector<8x32xf32>
    %54 = vector.extract_strided_slice %44 {offsets = [0, 32], sizes = [8, 32], strides = [1, 1]} : vector<8x96xf32> to vector<8x32xf32>
    %55 = arith.addf %53, %54 : vector<8x32xf32>
    %56 = arith.negf %55 : vector<8x32xf32>
    %57 = math.exp %56 : vector<8x32xf32>
    %cst_19 = arith.constant 1.000000e+00 : f32
    %58 = vector.broadcast %cst_19 : f32 to vector<8x32xf32>
    %59 = arith.addf %58, %57 : vector<8x32xf32>
    %60 = arith.divf %58, %59 : vector<8x32xf32>
    %61 = vector.extract_strided_slice %41 {offsets = [0, 64], sizes = [8, 32], strides = [1, 1]} : vector<8x96xf32> to vector<8x32xf32>
    %62 = vector.extract_strided_slice %44 {offsets = [0, 64], sizes = [8, 32], strides = [1, 1]} : vector<8x96xf32> to vector<8x32xf32>
    %63 = arith.mulf %52, %62 : vector<8x32xf32>
    %64 = arith.addf %61, %63 : vector<8x32xf32>
    %65 = math.tanh %64 : vector<8x32xf32>
    %cst_20 = arith.constant 1.000000e+00 : f32
    %66 = vector.broadcast %cst_20 : f32 to vector<8x32xf32>
    %67 = arith.subf %66, %60 : vector<8x32xf32>
    %68 = arith.mulf %67, %65 : vector<8x32xf32>
    %69 = arith.mulf %60, %36 : vector<8x32xf32>
    %70 = arith.addf %68, %69 : vector<8x32xf32>
    %c1_21 = arith.constant 1 : index
    %c0_22 = arith.constant 0 : index
    %c0_23 = arith.constant 0 : index
    %71 = vector.load %arg4[%c1_21, %c0_22, %c0_23] : memref<8x8x32xf32, #tpu.memory_space<vmem>>, vector<1x8x32xf32>
    %72 = vector.shape_cast %71 : vector<1x8x32xf32> to vector<8x32xf32>
    %73 = vector.shape_cast %70 : vector<8x32xf32> to vector<1x8x32xf32>
    tpu.vector_store %arg4[%c1_21, %c0_22, %c0_23], %73 {strides = array<i32>} : memref<8x8x32xf32, #tpu.memory_space<vmem>>, vector<1x8x32xf32>,
    %c2 = arith.constant 2 : index
    %c0_24 = arith.constant 0 : index
    %c0_25 = arith.constant 0 : index
    %74 = vector.load %arg1[%c2, %c0_24, %c0_25] : memref<8x8x96xf32, #tpu.memory_space<vmem>>, vector<1x8x96xf32>
    %75 = vector.shape_cast %74 : vector<1x8x96xf32> to vector<8x96xf32>
    %cst_26 = arith.constant dense<0.000000e+00> : vector<8x96xf32>
    %76 = tpu.matmul %70, %3, %cst_26 {dimension_numbers = #tpu.dot_dimension_numbers<[1], [0], [0], [1], [0, 0, 1, 1], [], []>} : vector<8x32xf32>, vector<32x96xf32>, vector<8x96xf32> -> vector<8x96xf32>
    %77 = vector.broadcast %4 : vector<1x96xf32> to vector<8x96xf32>
    %78 = arith.addf %76, %77 : vector<8x96xf32>
    %79 = vector.extract_strided_slice %75 {offsets = [0, 0], sizes = [8, 32], strides = [1, 1]} : vector<8x96xf32> to vector<8x32xf32>
    %80 = vector.extract_strided_slice %78 {offsets = [0, 0], sizes = [8, 32], strides = [1, 1]} : vector<8x96xf32> to vector<8x32xf32>
    %81 = arith.addf %79, %80 : vector<8x32xf32>
    %82 = arith.negf %81 : vector<8x32xf32>
    %83 = math.exp %82 : vector<8x32xf32>
    %cst_27 = arith.constant 1.000000e+00 : f32
    %84 = vector.broadcast %cst_27 : f32 to vector<8x32xf32>
    %85 = arith.addf %84, %83 : vector<8x32xf32>
    %86 = arith.divf %84, %85 : vector<8x32xf32>
    %87 = vector.extract_strided_slice %75 {offsets = [0, 32], sizes = [8, 32], strides = [1, 1]} : vector<8x96xf32> to vector<8x32xf32>
    %88 = vector.extract_strided_slice %78 {offsets = [0, 32], sizes = [8, 32], strides = [1, 1]} : vector<8x96xf32> to vector<8x32xf32>
    %89 = arith.addf %87, %88 : vector<8x32xf32>
    %90 = arith.negf %89 : vector<8x32xf32>
    %91 = math.exp %90 : vector<8x32xf32>
    %cst_28 = arith.constant 1.000000e+00 : f32
    %92 = vector.broadcast %cst_28 : f32 to vector<8x32xf32>
    %93 = arith.addf %92, %91 : vector<8x32xf32>
    %94 = arith.divf %92, %93 : vector<8x32xf32>
    %95 = vector.extract_strided_slice %75 {offsets = [0, 64], sizes = [8, 32], strides = [1, 1]} : vector<8x96xf32> to vector<8x32xf32>
    %96 = vector.extract_strided_slice %78 {offsets = [0, 64], sizes = [8, 32], strides = [1, 1]} : vector<8x96xf32> to vector<8x32xf32>
    %97 = arith.mulf %86, %96 : vector<8x32xf32>
    %98 = arith.addf %95, %97 : vector<8x32xf32>
    %99 = math.tanh %98 : vector<8x32xf32>
    %cst_29 = arith.constant 1.000000e+00 : f32
    %100 = vector.broadcast %cst_29 : f32 to vector<8x32xf32>
    %101 = arith.subf %100, %94 : vector<8x32xf32>
    %102 = arith.mulf %101, %99 : vector<8x32xf32>
    %103 = arith.mulf %94, %70 : vector<8x32xf32>
    %104 = arith.addf %102, %103 : vector<8x32xf32>
    %c2_30 = arith.constant 2 : index
    %c0_31 = arith.constant 0 : index
    %c0_32 = arith.constant 0 : index
    %105 = vector.load %arg4[%c2_30, %c0_31, %c0_32] : memref<8x8x32xf32, #tpu.memory_space<vmem>>, vector<1x8x32xf32>
    %106 = vector.shape_cast %105 : vector<1x8x32xf32> to vector<8x32xf32>
    %107 = vector.shape_cast %104 : vector<8x32xf32> to vector<1x8x32xf32>
    tpu.vector_store %arg4[%c2_30, %c0_31, %c0_32], %107 {strides = array<i32>} : memref<8x8x32xf32, #tpu.memory_space<vmem>>, vector<1x8x32xf32>,
    %c3 = arith.constant 3 : index
    %c0_33 = arith.constant 0 : index
    %c0_34 = arith.constant 0 : index
    %108 = vector.load %arg1[%c3, %c0_33, %c0_34] : memref<8x8x96xf32, #tpu.memory_space<vmem>>, vector<1x8x96xf32>
    %109 = vector.shape_cast %108 : vector<1x8x96xf32> to vector<8x96xf32>
    %cst_35 = arith.constant dense<0.000000e+00> : vector<8x96xf32>
    %110 = tpu.matmul %104, %3, %cst_35 {dimension_numbers = #tpu.dot_dimension_numbers<[1], [0], [0], [1], [0, 0, 1, 1], [], []>} : vector<8x32xf32>, vector<32x96xf32>, vector<8x96xf32> -> vector<8x96xf32>
    %111 = vector.broadcast %4 : vector<1x96xf32> to vector<8x96xf32>
    %112 = arith.addf %110, %111 : vector<8x96xf32>
    %113 = vector.extract_strided_slice %109 {offsets = [0, 0], sizes = [8, 32], strides = [1, 1]} : vector<8x96xf32> to vector<8x32xf32>
    %114 = vector.extract_strided_slice %112 {offsets = [0, 0], sizes = [8, 32], strides = [1, 1]} : vector<8x96xf32> to vector<8x32xf32>
    %115 = arith.addf %113, %114 : vector<8x32xf32>
    %116 = arith.negf %115 : vector<8x32xf32>
    %117 = math.exp %116 : vector<8x32xf32>
    %cst_36 = arith.constant 1.000000e+00 : f32
    %118 = vector.broadcast %cst_36 : f32 to vector<8x32xf32>
    %119 = arith.addf %118, %117 : vector<8x32xf32>
    %120 = arith.divf %118, %119 : vector<8x32xf32>
    %121 = vector.extract_strided_slice %109 {offsets = [0, 32], sizes = [8, 32], strides = [1, 1]} : vector<8x96xf32> to vector<8x32xf32>
    %122 = vector.extract_strided_slice %112 {offsets = [0, 32], sizes = [8, 32], strides = [1, 1]} : vector<8x96xf32> to vector<8x32xf32>
    %123 = arith.addf %121, %122 : vector<8x32xf32>
    %124 = arith.negf %123 : vector<8x32xf32>
    %125 = math.exp %124 : vector<8x32xf32>
    %cst_37 = arith.constant 1.000000e+00 : f32
    %126 = vector.broadcast %cst_37 : f32 to vector<8x32xf32>
    %127 = arith.addf %126, %125 : vector<8x32xf32>
    %128 = arith.divf %126, %127 : vector<8x32xf32>
    %129 = vector.extract_strided_slice %109 {offsets = [0, 64], sizes = [8, 32], strides = [1, 1]} : vector<8x96xf32> to vector<8x32xf32>
    %130 = vector.extract_strided_slice %112 {offsets = [0, 64], sizes = [8, 32], strides = [1, 1]} : vector<8x96xf32> to vector<8x32xf32>
    %131 = arith.mulf %120, %130 : vector<8x32xf32>
    %132 = arith.addf %129, %131 : vector<8x32xf32>
    %133 = math.tanh %132 : vector<8x32xf32>
    %cst_38 = arith.constant 1.000000e+00 : f32
    %134 = vector.broadcast %cst_38 : f32 to vector<8x32xf32>
    %135 = arith.subf %134, %128 : vector<8x32xf32>
    %136 = arith.mulf %135, %133 : vector<8x32xf32>
    %137 = arith.mulf %128, %104 : vector<8x32xf32>
    %138 = arith.addf %136, %137 : vector<8x32xf32>
    %c3_39 = arith.constant 3 : index
    %c0_40 = arith.constant 0 : index
    %c0_41 = arith.constant 0 : index
    %139 = vector.load %arg4[%c3_39, %c0_40, %c0_41] : memref<8x8x32xf32, #tpu.memory_space<vmem>>, vector<1x8x32xf32>
    %140 = vector.shape_cast %139 : vector<1x8x32xf32> to vector<8x32xf32>
    %141 = vector.shape_cast %138 : vector<8x32xf32> to vector<1x8x32xf32>
    tpu.vector_store %arg4[%c3_39, %c0_40, %c0_41], %141 {strides = array<i32>} : memref<8x8x32xf32, #tpu.memory_space<vmem>>, vector<1x8x32xf32>,
    %c4 = arith.constant 4 : index
    %c0_42 = arith.constant 0 : index
    %c0_43 = arith.constant 0 : index
    %142 = vector.load %arg1[%c4, %c0_42, %c0_43] : memref<8x8x96xf32, #tpu.memory_space<vmem>>, vector<1x8x96xf32>
    %143 = vector.shape_cast %142 : vector<1x8x96xf32> to vector<8x96xf32>
    %cst_44 = arith.constant dense<0.000000e+00> : vector<8x96xf32>
    %144 = tpu.matmul %138, %3, %cst_44 {dimension_numbers = #tpu.dot_dimension_numbers<[1], [0], [0], [1], [0, 0, 1, 1], [], []>} : vector<8x32xf32>, vector<32x96xf32>, vector<8x96xf32> -> vector<8x96xf32>
    %145 = vector.broadcast %4 : vector<1x96xf32> to vector<8x96xf32>
    %146 = arith.addf %144, %145 : vector<8x96xf32>
    %147 = vector.extract_strided_slice %143 {offsets = [0, 0], sizes = [8, 32], strides = [1, 1]} : vector<8x96xf32> to vector<8x32xf32>
    %148 = vector.extract_strided_slice %146 {offsets = [0, 0], sizes = [8, 32], strides = [1, 1]} : vector<8x96xf32> to vector<8x32xf32>
    %149 = arith.addf %147, %148 : vector<8x32xf32>
    %150 = arith.negf %149 : vector<8x32xf32>
    %151 = math.exp %150 : vector<8x32xf32>
    %cst_45 = arith.constant 1.000000e+00 : f32
    %152 = vector.broadcast %cst_45 : f32 to vector<8x32xf32>
    %153 = arith.addf %152, %151 : vector<8x32xf32>
    %154 = arith.divf %152, %153 : vector<8x32xf32>
    %155 = vector.extract_strided_slice %143 {offsets = [0, 32], sizes = [8, 32], strides = [1, 1]} : vector<8x96xf32> to vector<8x32xf32>
    %156 = vector.extract_strided_slice %146 {offsets = [0, 32], sizes = [8, 32], strides = [1, 1]} : vector<8x96xf32> to vector<8x32xf32>
    %157 = arith.addf %155, %156 : vector<8x32xf32>
    %158 = arith.negf %157 : vector<8x32xf32>
    %159 = math.exp %158 : vector<8x32xf32>
    %cst_46 = arith.constant 1.000000e+00 : f32
    %160 = vector.broadcast %cst_46 : f32 to vector<8x32xf32>
    %161 = arith.addf %160, %159 : vector<8x32xf32>
    %162 = arith.divf %160, %161 : vector<8x32xf32>
    %163 = vector.extract_strided_slice %143 {offsets = [0, 64], sizes = [8, 32], strides = [1, 1]} : vector<8x96xf32> to vector<8x32xf32>
    %164 = vector.extract_strided_slice %146 {offsets = [0, 64], sizes = [8, 32], strides = [1, 1]} : vector<8x96xf32> to vector<8x32xf32>
    %165 = arith.mulf %154, %164 : vector<8x32xf32>
    %166 = arith.addf %163, %165 : vector<8x32xf32>
    %167 = math.tanh %166 : vector<8x32xf32>
    %cst_47 = arith.constant 1.000000e+00 : f32
    %168 = vector.broadcast %cst_47 : f32 to vector<8x32xf32>
    %169 = arith.subf %168, %162 : vector<8x32xf32>
    %170 = arith.mulf %169, %167 : vector<8x32xf32>
    %171 = arith.mulf %162, %138 : vector<8x32xf32>
    %172 = arith.addf %170, %171 : vector<8x32xf32>
    %c4_48 = arith.constant 4 : index
    %c0_49 = arith.constant 0 : index
    %c0_50 = arith.constant 0 : index
    %173 = vector.load %arg4[%c4_48, %c0_49, %c0_50] : memref<8x8x32xf32, #tpu.memory_space<vmem>>, vector<1x8x32xf32>
    %174 = vector.shape_cast %173 : vector<1x8x32xf32> to vector<8x32xf32>
    %175 = vector.shape_cast %172 : vector<8x32xf32> to vector<1x8x32xf32>
    tpu.vector_store %arg4[%c4_48, %c0_49, %c0_50], %175 {strides = array<i32>} : memref<8x8x32xf32, #tpu.memory_space<vmem>>, vector<1x8x32xf32>,
    %c5 = arith.constant 5 : index
    %c0_51 = arith.constant 0 : index
    %c0_52 = arith.constant 0 : index
    %176 = vector.load %arg1[%c5, %c0_51, %c0_52] : memref<8x8x96xf32, #tpu.memory_space<vmem>>, vector<1x8x96xf32>
    %177 = vector.shape_cast %176 : vector<1x8x96xf32> to vector<8x96xf32>
    %cst_53 = arith.constant dense<0.000000e+00> : vector<8x96xf32>
    %178 = tpu.matmul %172, %3, %cst_53 {dimension_numbers = #tpu.dot_dimension_numbers<[1], [0], [0], [1], [0, 0, 1, 1], [], []>} : vector<8x32xf32>, vector<32x96xf32>, vector<8x96xf32> -> vector<8x96xf32>
    %179 = vector.broadcast %4 : vector<1x96xf32> to vector<8x96xf32>
    %180 = arith.addf %178, %179 : vector<8x96xf32>
    %181 = vector.extract_strided_slice %177 {offsets = [0, 0], sizes = [8, 32], strides = [1, 1]} : vector<8x96xf32> to vector<8x32xf32>
    %182 = vector.extract_strided_slice %180 {offsets = [0, 0], sizes = [8, 32], strides = [1, 1]} : vector<8x96xf32> to vector<8x32xf32>
    %183 = arith.addf %181, %182 : vector<8x32xf32>
    %184 = arith.negf %183 : vector<8x32xf32>
    %185 = math.exp %184 : vector<8x32xf32>
    %cst_54 = arith.constant 1.000000e+00 : f32
    %186 = vector.broadcast %cst_54 : f32 to vector<8x32xf32>
    %187 = arith.addf %186, %185 : vector<8x32xf32>
    %188 = arith.divf %186, %187 : vector<8x32xf32>
    %189 = vector.extract_strided_slice %177 {offsets = [0, 32], sizes = [8, 32], strides = [1, 1]} : vector<8x96xf32> to vector<8x32xf32>
    %190 = vector.extract_strided_slice %180 {offsets = [0, 32], sizes = [8, 32], strides = [1, 1]} : vector<8x96xf32> to vector<8x32xf32>
    %191 = arith.addf %189, %190 : vector<8x32xf32>
    %192 = arith.negf %191 : vector<8x32xf32>
    %193 = math.exp %192 : vector<8x32xf32>
    %cst_55 = arith.constant 1.000000e+00 : f32
    %194 = vector.broadcast %cst_55 : f32 to vector<8x32xf32>
    %195 = arith.addf %194, %193 : vector<8x32xf32>
    %196 = arith.divf %194, %195 : vector<8x32xf32>
    %197 = vector.extract_strided_slice %177 {offsets = [0, 64], sizes = [8, 32], strides = [1, 1]} : vector<8x96xf32> to vector<8x32xf32>
    %198 = vector.extract_strided_slice %180 {offsets = [0, 64], sizes = [8, 32], strides = [1, 1]} : vector<8x96xf32> to vector<8x32xf32>
    %199 = arith.mulf %188, %198 : vector<8x32xf32>
    %200 = arith.addf %197, %199 : vector<8x32xf32>
    %201 = math.tanh %200 : vector<8x32xf32>
    %cst_56 = arith.constant 1.000000e+00 : f32
    %202 = vector.broadcast %cst_56 : f32 to vector<8x32xf32>
    %203 = arith.subf %202, %196 : vector<8x32xf32>
    %204 = arith.mulf %203, %201 : vector<8x32xf32>
    %205 = arith.mulf %196, %172 : vector<8x32xf32>
    %206 = arith.addf %204, %205 : vector<8x32xf32>
    %c5_57 = arith.constant 5 : index
    %c0_58 = arith.constant 0 : index
    %c0_59 = arith.constant 0 : index
    %207 = vector.load %arg4[%c5_57, %c0_58, %c0_59] : memref<8x8x32xf32, #tpu.memory_space<vmem>>, vector<1x8x32xf32>
    %208 = vector.shape_cast %207 : vector<1x8x32xf32> to vector<8x32xf32>
    %209 = vector.shape_cast %206 : vector<8x32xf32> to vector<1x8x32xf32>
    tpu.vector_store %arg4[%c5_57, %c0_58, %c0_59], %209 {strides = array<i32>} : memref<8x8x32xf32, #tpu.memory_space<vmem>>, vector<1x8x32xf32>,
    %c6 = arith.constant 6 : index
    %c0_60 = arith.constant 0 : index
    %c0_61 = arith.constant 0 : index
    %210 = vector.load %arg1[%c6, %c0_60, %c0_61] : memref<8x8x96xf32, #tpu.memory_space<vmem>>, vector<1x8x96xf32>
    %211 = vector.shape_cast %210 : vector<1x8x96xf32> to vector<8x96xf32>
    %cst_62 = arith.constant dense<0.000000e+00> : vector<8x96xf32>
    %212 = tpu.matmul %206, %3, %cst_62 {dimension_numbers = #tpu.dot_dimension_numbers<[1], [0], [0], [1], [0, 0, 1, 1], [], []>} : vector<8x32xf32>, vector<32x96xf32>, vector<8x96xf32> -> vector<8x96xf32>
    %213 = vector.broadcast %4 : vector<1x96xf32> to vector<8x96xf32>
    %214 = arith.addf %212, %213 : vector<8x96xf32>
    %215 = vector.extract_strided_slice %211 {offsets = [0, 0], sizes = [8, 32], strides = [1, 1]} : vector<8x96xf32> to vector<8x32xf32>
    %216 = vector.extract_strided_slice %214 {offsets = [0, 0], sizes = [8, 32], strides = [1, 1]} : vector<8x96xf32> to vector<8x32xf32>
    %217 = arith.addf %215, %216 : vector<8x32xf32>
    %218 = arith.negf %217 : vector<8x32xf32>
    %219 = math.exp %218 : vector<8x32xf32>
    %cst_63 = arith.constant 1.000000e+00 : f32
    %220 = vector.broadcast %cst_63 : f32 to vector<8x32xf32>
    %221 = arith.addf %220, %219 : vector<8x32xf32>
    %222 = arith.divf %220, %221 : vector<8x32xf32>
    %223 = vector.extract_strided_slice %211 {offsets = [0, 32], sizes = [8, 32], strides = [1, 1]} : vector<8x96xf32> to vector<8x32xf32>
    %224 = vector.extract_strided_slice %214 {offsets = [0, 32], sizes = [8, 32], strides = [1, 1]} : vector<8x96xf32> to vector<8x32xf32>
    %225 = arith.addf %223, %224 : vector<8x32xf32>
    %226 = arith.negf %225 : vector<8x32xf32>
    %227 = math.exp %226 : vector<8x32xf32>
    %cst_64 = arith.constant 1.000000e+00 : f32
    %228 = vector.broadcast %cst_64 : f32 to vector<8x32xf32>
    %229 = arith.addf %228, %227 : vector<8x32xf32>
    %230 = arith.divf %228, %229 : vector<8x32xf32>
    %231 = vector.extract_strided_slice %211 {offsets = [0, 64], sizes = [8, 32], strides = [1, 1]} : vector<8x96xf32> to vector<8x32xf32>
    %232 = vector.extract_strided_slice %214 {offsets = [0, 64], sizes = [8, 32], strides = [1, 1]} : vector<8x96xf32> to vector<8x32xf32>
    %233 = arith.mulf %222, %232 : vector<8x32xf32>
    %234 = arith.addf %231, %233 : vector<8x32xf32>
    %235 = math.tanh %234 : vector<8x32xf32>
    %cst_65 = arith.constant 1.000000e+00 : f32
    %236 = vector.broadcast %cst_65 : f32 to vector<8x32xf32>
    %237 = arith.subf %236, %230 : vector<8x32xf32>
    %238 = arith.mulf %237, %235 : vector<8x32xf32>
    %239 = arith.mulf %230, %206 : vector<8x32xf32>
    %240 = arith.addf %238, %239 : vector<8x32xf32>
    %c6_66 = arith.constant 6 : index
    %c0_67 = arith.constant 0 : index
    %c0_68 = arith.constant 0 : index
    %241 = vector.load %arg4[%c6_66, %c0_67, %c0_68] : memref<8x8x32xf32, #tpu.memory_space<vmem>>, vector<1x8x32xf32>
    %242 = vector.shape_cast %241 : vector<1x8x32xf32> to vector<8x32xf32>
    %243 = vector.shape_cast %240 : vector<8x32xf32> to vector<1x8x32xf32>
    tpu.vector_store %arg4[%c6_66, %c0_67, %c0_68], %243 {strides = array<i32>} : memref<8x8x32xf32, #tpu.memory_space<vmem>>, vector<1x8x32xf32>,
    %c7 = arith.constant 7 : index
    %c0_69 = arith.constant 0 : index
    %c0_70 = arith.constant 0 : index
    %244 = vector.load %arg1[%c7, %c0_69, %c0_70] : memref<8x8x96xf32, #tpu.memory_space<vmem>>, vector<1x8x96xf32>
    %245 = vector.shape_cast %244 : vector<1x8x96xf32> to vector<8x96xf32>
    %cst_71 = arith.constant dense<0.000000e+00> : vector<8x96xf32>
    %246 = tpu.matmul %240, %3, %cst_71 {dimension_numbers = #tpu.dot_dimension_numbers<[1], [0], [0], [1], [0, 0, 1, 1], [], []>} : vector<8x32xf32>, vector<32x96xf32>, vector<8x96xf32> -> vector<8x96xf32>
    %247 = vector.broadcast %4 : vector<1x96xf32> to vector<8x96xf32>
    %248 = arith.addf %246, %247 : vector<8x96xf32>
    %249 = vector.extract_strided_slice %245 {offsets = [0, 0], sizes = [8, 32], strides = [1, 1]} : vector<8x96xf32> to vector<8x32xf32>
    %250 = vector.extract_strided_slice %248 {offsets = [0, 0], sizes = [8, 32], strides = [1, 1]} : vector<8x96xf32> to vector<8x32xf32>
    %251 = arith.addf %249, %250 : vector<8x32xf32>
    %252 = arith.negf %251 : vector<8x32xf32>
    %253 = math.exp %252 : vector<8x32xf32>
    %cst_72 = arith.constant 1.000000e+00 : f32
    %254 = vector.broadcast %cst_72 : f32 to vector<8x32xf32>
    %255 = arith.addf %254, %253 : vector<8x32xf32>
    %256 = arith.divf %254, %255 : vector<8x32xf32>
    %257 = vector.extract_strided_slice %245 {offsets = [0, 32], sizes = [8, 32], strides = [1, 1]} : vector<8x96xf32> to vector<8x32xf32>
    %258 = vector.extract_strided_slice %248 {offsets = [0, 32], sizes = [8, 32], strides = [1, 1]} : vector<8x96xf32> to vector<8x32xf32>
    %259 = arith.addf %257, %258 : vector<8x32xf32>
    %260 = arith.negf %259 : vector<8x32xf32>
    %261 = math.exp %260 : vector<8x32xf32>
    %cst_73 = arith.constant 1.000000e+00 : f32
    %262 = vector.broadcast %cst_73 : f32 to vector<8x32xf32>
    %263 = arith.addf %262, %261 : vector<8x32xf32>
    %264 = arith.divf %262, %263 : vector<8x32xf32>
    %265 = vector.extract_strided_slice %245 {offsets = [0, 64], sizes = [8, 32], strides = [1, 1]} : vector<8x96xf32> to vector<8x32xf32>
    %266 = vector.extract_strided_slice %248 {offsets = [0, 64], sizes = [8, 32], strides = [1, 1]} : vector<8x96xf32> to vector<8x32xf32>
    %267 = arith.mulf %256, %266 : vector<8x32xf32>
    %268 = arith.addf %265, %267 : vector<8x32xf32>
    %269 = math.tanh %268 : vector<8x32xf32>
    %cst_74 = arith.constant 1.000000e+00 : f32
    %270 = vector.broadcast %cst_74 : f32 to vector<8x32xf32>
    %271 = arith.subf %270, %264 : vector<8x32xf32>
    %272 = arith.mulf %271, %269 : vector<8x32xf32>
    %273 = arith.mulf %264, %240 : vector<8x32xf32>
    %274 = arith.addf %272, %273 : vector<8x32xf32>
    %c7_75 = arith.constant 7 : index
    %c0_76 = arith.constant 0 : index
    %c0_77 = arith.constant 0 : index
    %275 = vector.load %arg4[%c7_75, %c0_76, %c0_77] : memref<8x8x32xf32, #tpu.memory_space<vmem>>, vector<1x8x32xf32>
    %276 = vector.shape_cast %275 : vector<1x8x32xf32> to vector<8x32xf32>
    %277 = vector.shape_cast %274 : vector<8x32xf32> to vector<1x8x32xf32>
    tpu.vector_store %arg4[%c7_75, %c0_76, %c0_77], %277 {strides = array<i32>} : memref<8x8x32xf32, #tpu.memory_space<vmem>>, vector<1x8x32xf32>,
    %c0_78 = arith.constant 0 : index
    %c0_79 = arith.constant 0 : index
    %278 = vector.load %arg6[%c0_78, %c0_79] : memref<8x32xf32, #tpu.memory_space<vmem>>, vector<8x32xf32>
    tpu.vector_store %arg6[%c0_78, %c0_79], %274 {strides = array<i32>} : memref<8x32xf32, #tpu.memory_space<vmem>>, vector<8x32xf32>,
    %c0_i32_80 = arith.constant 0 : i32
    %279 = arith.cmpi eq, %arg0, %c0_i32_80 : i32
    %280 = arith.extui %279 : i1 to i32
    %c0_i32_81 = arith.constant 0 : i32
    %281 = arith.cmpi ne, %280, %c0_i32_81 : i32
    scf.if %281 {
      %c0_82 = arith.constant 0 : index
      %c0_83 = arith.constant 0 : index
      %282 = vector.load %arg5[%c0_82, %c0_83] : memref<8x32xf32, #tpu.memory_space<vmem>>, vector<8x32xf32>
      tpu.vector_store %arg5[%c0_82, %c0_83], %274 {strides = array<i32>} : memref<8x32xf32, #tpu.memory_space<vmem>>, vector<8x32xf32>,
    } else {
    }
    return
  }
  func.func @transform_0(%arg0: i32) -> (i32, i32, i32) {
    %c0_i32 = arith.constant 0 : i32
    %c0_i32_0 = arith.constant 0 : i32
    %c0_i32_1 = arith.constant 0 : i32
    return %arg0, %c0_i32, %c0_i32_0 : i32, i32, i32
  }
  func.func @transform_1(%arg0: i32) -> (i32, i32) {
    %c0_i32 = arith.constant 0 : i32
    %c0_i32_0 = arith.constant 0 : i32
    %c0_i32_1 = arith.constant 0 : i32
    return %c0_i32, %c0_i32_0 : i32, i32
  }
  func.func @transform_2(%arg0: i32) -> (i32, i32) {
    %c0_i32 = arith.constant 0 : i32
    %c0_i32_0 = arith.constant 0 : i32
    %c0_i32_1 = arith.constant 0 : i32
    return %c0_i32, %c0_i32_0 : i32, i32
  }
  func.func @transform_3(%arg0: i32) -> (i32, i32, i32) {
    %c0_i32 = arith.constant 0 : i32
    %c0_i32_0 = arith.constant 0 : i32
    %c0_i32_1 = arith.constant 0 : i32
    return %arg0, %c0_i32, %c0_i32_0 : i32, i32, i32
  }
  func.func @transform_4(%arg0: i32) -> (i32, i32) {
    %c0_i32 = arith.constant 0 : i32
    %c0_i32_0 = arith.constant 0 : i32
    %c0_i32_1 = arith.constant 0 : i32
    return %c0_i32, %c0_i32_0 : i32, i32
  }
}

module attributes {stable_mosaic.version = 11 : i64} {
  func.func @_gru_recurrence_kernel(%arg0: i32, %arg1: memref<8x8x96xf32, #tpu.memory_space<vmem>>, %arg2: memref<32x96xf32, #tpu.memory_space<vmem>>, %arg3: memref<1x96xf32, #tpu.memory_space<vmem>>, %arg4: memref<8x8x32xf32, #tpu.memory_space<vmem>>, %arg5: memref<8x32xf32, #tpu.memory_space<vmem>>, %arg6: memref<8x32xf32, #tpu.memory_space<vmem>>) attributes {dimension_semantics = [#tpu.dimension_semantics<arbitrary>], iteration_bounds = array<i64: 1>, scalar_prefetch = 0 : i64, scratch_operands = 1 : i64, tpu.core_type = #tpu.core_type<tc>, window_params = [{transform_indices = @transform_0, window_bounds = array<i64: 8, 8, 96>}, {pipeline_mode = #tpu.pipeline_mode<synchronous>, transform_indices = @transform_1, window_bounds = array<i64: 32, 96>}, {pipeline_mode = #tpu.pipeline_mode<synchronous>, transform_indices = @transform_2, window_bounds = array<i64: 1, 96>}, {transform_indices = @transform_3, window_bounds = array<i64: 8, 8, 32>}, {pipeline_mode = #tpu.pipeline_mode<synchronous>, transform_indices = @transform_4, window_bounds = array<i64: 8, 32>}]} {
    %c0_i32 = arith.constant 0 : i32
    %0 = arith.cmpi eq, %arg0, %c0_i32 : i32
    %1 = arith.extui %0 : i1 to i32
    %c0_i32_0 = arith.constant 0 : i32
    %2 = arith.cmpi ne, %1, %c0_i32_0 : i32
    scf.if %2 {
      %cst_82 = arith.constant 0.000000e+00 : f32
      %282 = vector.broadcast %cst_82 : f32 to vector<8x32xf32>
      %c0_83 = arith.constant 0 : index
      %c0_84 = arith.constant 0 : index
      %283 = vector.load %arg6[%c0_83, %c0_84] : memref<8x32xf32, #tpu.memory_space<vmem>>, vector<8x32xf32>
      tpu.vector_store %arg6[%c0_83, %c0_84], %282 {strides = array<i32>} : memref<8x32xf32, #tpu.memory_space<vmem>>, vector<8x32xf32>,
    } else {
    }
    %c0 = arith.constant 0 : index
    %c0_1 = arith.constant 0 : index
    %3 = vector.load %arg2[%c0, %c0_1] : memref<32x96xf32, #tpu.memory_space<vmem>>, vector<32x96xf32>
    %c0_2 = arith.constant 0 : index
    %c0_3 = arith.constant 0 : index
    %4 = vector.load %arg3[%c0_2, %c0_3] : memref<1x96xf32, #tpu.memory_space<vmem>>, vector<1x96xf32>
    %c0_4 = arith.constant 0 : index
    %c0_5 = arith.constant 0 : index
    %5 = vector.load %arg6[%c0_4, %c0_5] : memref<8x32xf32, #tpu.memory_space<vmem>>, vector<8x32xf32>
    %c0_6 = arith.constant 0 : index
    %c0_7 = arith.constant 0 : index
    %c0_8 = arith.constant 0 : index
    %6 = vector.load %arg1[%c0_6, %c0_7, %c0_8] : memref<8x8x96xf32, #tpu.memory_space<vmem>>, vector<1x8x96xf32>
    %7 = vector.shape_cast %6 : vector<1x8x96xf32> to vector<8x96xf32>
    %cst = arith.constant dense<0.000000e+00> : vector<8x96xf32>
    %8 = tpu.matmul %5, %3, %cst {dimension_numbers = #tpu.dot_dimension_numbers<[1], [0], [0], [1], [0, 0, 1, 1], [], []>} : vector<8x32xf32>, vector<32x96xf32>, vector<8x96xf32> -> vector<8x96xf32>
    %9 = vector.broadcast %4 : vector<1x96xf32> to vector<8x96xf32>
    %10 = arith.addf %8, %9 : vector<8x96xf32>
    %11 = vector.extract_strided_slice %7 {offsets = [0, 0], sizes = [8, 32], strides = [1, 1]} : vector<8x96xf32> to vector<8x32xf32>
    %12 = vector.extract_strided_slice %10 {offsets = [0, 0], sizes = [8, 32], strides = [1, 1]} : vector<8x96xf32> to vector<8x32xf32>
    %13 = arith.addf %11, %12 : vector<8x32xf32>
    %14 = arith.negf %13 : vector<8x32xf32>
    %15 = math.exp %14 : vector<8x32xf32>
    %cst_9 = arith.constant 1.000000e+00 : f32
    %16 = vector.broadcast %cst_9 : f32 to vector<8x32xf32>
    %17 = arith.addf %16, %15 : vector<8x32xf32>
    %18 = arith.divf %16, %17 : vector<8x32xf32>
    %19 = vector.extract_strided_slice %7 {offsets = [0, 32], sizes = [8, 32], strides = [1, 1]} : vector<8x96xf32> to vector<8x32xf32>
    %20 = vector.extract_strided_slice %10 {offsets = [0, 32], sizes = [8, 32], strides = [1, 1]} : vector<8x96xf32> to vector<8x32xf32>
    %21 = arith.addf %19, %20 : vector<8x32xf32>
    %22 = arith.negf %21 : vector<8x32xf32>
    %23 = math.exp %22 : vector<8x32xf32>
    %cst_10 = arith.constant 1.000000e+00 : f32
    %24 = vector.broadcast %cst_10 : f32 to vector<8x32xf32>
    %25 = arith.addf %24, %23 : vector<8x32xf32>
    %26 = arith.divf %24, %25 : vector<8x32xf32>
    %27 = vector.extract_strided_slice %7 {offsets = [0, 64], sizes = [8, 32], strides = [1, 1]} : vector<8x96xf32> to vector<8x32xf32>
    %28 = vector.extract_strided_slice %10 {offsets = [0, 64], sizes = [8, 32], strides = [1, 1]} : vector<8x96xf32> to vector<8x32xf32>
    %29 = arith.mulf %18, %28 : vector<8x32xf32>
    %30 = arith.addf %27, %29 : vector<8x32xf32>
    %31 = math.tanh %30 : vector<8x32xf32>
    %cst_11 = arith.constant 1.000000e+00 : f32
    %32 = vector.broadcast %cst_11 : f32 to vector<8x32xf32>
    %33 = arith.subf %32, %26 : vector<8x32xf32>
    %34 = arith.mulf %33, %31 : vector<8x32xf32>
    %35 = arith.mulf %26, %5 : vector<8x32xf32>
    %36 = arith.addf %34, %35 : vector<8x32xf32>
    %c0_12 = arith.constant 0 : index
    %c0_13 = arith.constant 0 : index
    %c0_14 = arith.constant 0 : index
    %37 = vector.load %arg4[%c0_12, %c0_13, %c0_14] : memref<8x8x32xf32, #tpu.memory_space<vmem>>, vector<1x8x32xf32>
    %38 = vector.shape_cast %37 : vector<1x8x32xf32> to vector<8x32xf32>
    %39 = vector.shape_cast %36 : vector<8x32xf32> to vector<1x8x32xf32>
    tpu.vector_store %arg4[%c0_12, %c0_13, %c0_14], %39 {strides = array<i32>} : memref<8x8x32xf32, #tpu.memory_space<vmem>>, vector<1x8x32xf32>,
    %c1 = arith.constant 1 : index
    %c0_15 = arith.constant 0 : index
    %c0_16 = arith.constant 0 : index
    %40 = vector.load %arg1[%c1, %c0_15, %c0_16] : memref<8x8x96xf32, #tpu.memory_space<vmem>>, vector<1x8x96xf32>
    %41 = vector.shape_cast %40 : vector<1x8x96xf32> to vector<8x96xf32>
    %cst_17 = arith.constant dense<0.000000e+00> : vector<8x96xf32>
    %42 = tpu.matmul %36, %3, %cst_17 {dimension_numbers = #tpu.dot_dimension_numbers<[1], [0], [0], [1], [0, 0, 1, 1], [], []>} : vector<8x32xf32>, vector<32x96xf32>, vector<8x96xf32> -> vector<8x96xf32>
    %43 = vector.broadcast %4 : vector<1x96xf32> to vector<8x96xf32>
    %44 = arith.addf %42, %43 : vector<8x96xf32>
    %45 = vector.extract_strided_slice %41 {offsets = [0, 0], sizes = [8, 32], strides = [1, 1]} : vector<8x96xf32> to vector<8x32xf32>
    %46 = vector.extract_strided_slice %44 {offsets = [0, 0], sizes = [8, 32], strides = [1, 1]} : vector<8x96xf32> to vector<8x32xf32>
    %47 = arith.addf %45, %46 : vector<8x32xf32>
    %48 = arith.negf %47 : vector<8x32xf32>
    %49 = math.exp %48 : vector<8x32xf32>
    %cst_18 = arith.constant 1.000000e+00 : f32
    %50 = vector.broadcast %cst_18 : f32 to vector<8x32xf32>
    %51 = arith.addf %50, %49 : vector<8x32xf32>
    %52 = arith.divf %50, %51 : vector<8x32xf32>
    %53 = vector.extract_strided_slice %41 {offsets = [0, 32], sizes = [8, 32], strides = [1, 1]} : vector<8x96xf32> to vector<8x32xf32>
    %54 = vector.extract_strided_slice %44 {offsets = [0, 32], sizes = [8, 32], strides = [1, 1]} : vector<8x96xf32> to vector<8x32xf32>
    %55 = arith.addf %53, %54 : vector<8x32xf32>
    %56 = arith.negf %55 : vector<8x32xf32>
    %57 = math.exp %56 : vector<8x32xf32>
    %cst_19 = arith.constant 1.000000e+00 : f32
    %58 = vector.broadcast %cst_19 : f32 to vector<8x32xf32>
    %59 = arith.addf %58, %57 : vector<8x32xf32>
    %60 = arith.divf %58, %59 : vector<8x32xf32>
    %61 = vector.extract_strided_slice %41 {offsets = [0, 64], sizes = [8, 32], strides = [1, 1]} : vector<8x96xf32> to vector<8x32xf32>
    %62 = vector.extract_strided_slice %44 {offsets = [0, 64], sizes = [8, 32], strides = [1, 1]} : vector<8x96xf32> to vector<8x32xf32>
    %63 = arith.mulf %52, %62 : vector<8x32xf32>
    %64 = arith.addf %61, %63 : vector<8x32xf32>
    %65 = math.tanh %64 : vector<8x32xf32>
    %cst_20 = arith.constant 1.000000e+00 : f32
    %66 = vector.broadcast %cst_20 : f32 to vector<8x32xf32>
    %67 = arith.subf %66, %60 : vector<8x32xf32>
    %68 = arith.mulf %67, %65 : vector<8x32xf32>
    %69 = arith.mulf %60, %36 : vector<8x32xf32>
    %70 = arith.addf %68, %69 : vector<8x32xf32>
    %c1_21 = arith.constant 1 : index
    %c0_22 = arith.constant 0 : index
    %c0_23 = arith.constant 0 : index
    %71 = vector.load %arg4[%c1_21, %c0_22, %c0_23] : memref<8x8x32xf32, #tpu.memory_space<vmem>>, vector<1x8x32xf32>
    %72 = vector.shape_cast %71 : vector<1x8x32xf32> to vector<8x32xf32>
    %73 = vector.shape_cast %70 : vector<8x32xf32> to vector<1x8x32xf32>
    tpu.vector_store %arg4[%c1_21, %c0_22, %c0_23], %73 {strides = array<i32>} : memref<8x8x32xf32, #tpu.memory_space<vmem>>, vector<1x8x32xf32>,
    %c2 = arith.constant 2 : index
    %c0_24 = arith.constant 0 : index
    %c0_25 = arith.constant 0 : index
    %74 = vector.load %arg1[%c2, %c0_24, %c0_25] : memref<8x8x96xf32, #tpu.memory_space<vmem>>, vector<1x8x96xf32>
    %75 = vector.shape_cast %74 : vector<1x8x96xf32> to vector<8x96xf32>
    %cst_26 = arith.constant dense<0.000000e+00> : vector<8x96xf32>
    %76 = tpu.matmul %70, %3, %cst_26 {dimension_numbers = #tpu.dot_dimension_numbers<[1], [0], [0], [1], [0, 0, 1, 1], [], []>} : vector<8x32xf32>, vector<32x96xf32>, vector<8x96xf32> -> vector<8x96xf32>
    %77 = vector.broadcast %4 : vector<1x96xf32> to vector<8x96xf32>
    %78 = arith.addf %76, %77 : vector<8x96xf32>
    %79 = vector.extract_strided_slice %75 {offsets = [0, 0], sizes = [8, 32], strides = [1, 1]} : vector<8x96xf32> to vector<8x32xf32>
    %80 = vector.extract_strided_slice %78 {offsets = [0, 0], sizes = [8, 32], strides = [1, 1]} : vector<8x96xf32> to vector<8x32xf32>
    %81 = arith.addf %79, %80 : vector<8x32xf32>
    %82 = arith.negf %81 : vector<8x32xf32>
    %83 = math.exp %82 : vector<8x32xf32>
    %cst_27 = arith.constant 1.000000e+00 : f32
    %84 = vector.broadcast %cst_27 : f32 to vector<8x32xf32>
    %85 = arith.addf %84, %83 : vector<8x32xf32>
    %86 = arith.divf %84, %85 : vector<8x32xf32>
    %87 = vector.extract_strided_slice %75 {offsets = [0, 32], sizes = [8, 32], strides = [1, 1]} : vector<8x96xf32> to vector<8x32xf32>
    %88 = vector.extract_strided_slice %78 {offsets = [0, 32], sizes = [8, 32], strides = [1, 1]} : vector<8x96xf32> to vector<8x32xf32>
    %89 = arith.addf %87, %88 : vector<8x32xf32>
    %90 = arith.negf %89 : vector<8x32xf32>
    %91 = math.exp %90 : vector<8x32xf32>
    %cst_28 = arith.constant 1.000000e+00 : f32
    %92 = vector.broadcast %cst_28 : f32 to vector<8x32xf32>
    %93 = arith.addf %92, %91 : vector<8x32xf32>
    %94 = arith.divf %92, %93 : vector<8x32xf32>
    %95 = vector.extract_strided_slice %75 {offsets = [0, 64], sizes = [8, 32], strides = [1, 1]} : vector<8x96xf32> to vector<8x32xf32>
    %96 = vector.extract_strided_slice %78 {offsets = [0, 64], sizes = [8, 32], strides = [1, 1]} : vector<8x96xf32> to vector<8x32xf32>
    %97 = arith.mulf %86, %96 : vector<8x32xf32>
    %98 = arith.addf %95, %97 : vector<8x32xf32>
    %99 = math.tanh %98 : vector<8x32xf32>
    %cst_29 = arith.constant 1.000000e+00 : f32
    %100 = vector.broadcast %cst_29 : f32 to vector<8x32xf32>
    %101 = arith.subf %100, %94 : vector<8x32xf32>
    %102 = arith.mulf %101, %99 : vector<8x32xf32>
    %103 = arith.mulf %94, %70 : vector<8x32xf32>
    %104 = arith.addf %102, %103 : vector<8x32xf32>
    %c2_30 = arith.constant 2 : index
    %c0_31 = arith.constant 0 : index
    %c0_32 = arith.constant 0 : index
    %105 = vector.load %arg4[%c2_30, %c0_31, %c0_32] : memref<8x8x32xf32, #tpu.memory_space<vmem>>, vector<1x8x32xf32>
    %106 = vector.shape_cast %105 : vector<1x8x32xf32> to vector<8x32xf32>
    %107 = vector.shape_cast %104 : vector<8x32xf32> to vector<1x8x32xf32>
    tpu.vector_store %arg4[%c2_30, %c0_31, %c0_32], %107 {strides = array<i32>} : memref<8x8x32xf32, #tpu.memory_space<vmem>>, vector<1x8x32xf32>,
    %c3 = arith.constant 3 : index
    %c0_33 = arith.constant 0 : index
    %c0_34 = arith.constant 0 : index
    %108 = vector.load %arg1[%c3, %c0_33, %c0_34] : memref<8x8x96xf32, #tpu.memory_space<vmem>>, vector<1x8x96xf32>
    %109 = vector.shape_cast %108 : vector<1x8x96xf32> to vector<8x96xf32>
    %cst_35 = arith.constant dense<0.000000e+00> : vector<8x96xf32>
    %110 = tpu.matmul %104, %3, %cst_35 {dimension_numbers = #tpu.dot_dimension_numbers<[1], [0], [0], [1], [0, 0, 1, 1], [], []>} : vector<8x32xf32>, vector<32x96xf32>, vector<8x96xf32> -> vector<8x96xf32>
    %111 = vector.broadcast %4 : vector<1x96xf32> to vector<8x96xf32>
    %112 = arith.addf %110, %111 : vector<8x96xf32>
    %113 = vector.extract_strided_slice %109 {offsets = [0, 0], sizes = [8, 32], strides = [1, 1]} : vector<8x96xf32> to vector<8x32xf32>
    %114 = vector.extract_strided_slice %112 {offsets = [0, 0], sizes = [8, 32], strides = [1, 1]} : vector<8x96xf32> to vector<8x32xf32>
    %115 = arith.addf %113, %114 : vector<8x32xf32>
    %116 = arith.negf %115 : vector<8x32xf32>
    %117 = math.exp %116 : vector<8x32xf32>
    %cst_36 = arith.constant 1.000000e+00 : f32
    %118 = vector.broadcast %cst_36 : f32 to vector<8x32xf32>
    %119 = arith.addf %118, %117 : vector<8x32xf32>
    %120 = arith.divf %118, %119 : vector<8x32xf32>
    %121 = vector.extract_strided_slice %109 {offsets = [0, 32], sizes = [8, 32], strides = [1, 1]} : vector<8x96xf32> to vector<8x32xf32>
    %122 = vector.extract_strided_slice %112 {offsets = [0, 32], sizes = [8, 32], strides = [1, 1]} : vector<8x96xf32> to vector<8x32xf32>
    %123 = arith.addf %121, %122 : vector<8x32xf32>
    %124 = arith.negf %123 : vector<8x32xf32>
    %125 = math.exp %124 : vector<8x32xf32>
    %cst_37 = arith.constant 1.000000e+00 : f32
    %126 = vector.broadcast %cst_37 : f32 to vector<8x32xf32>
    %127 = arith.addf %126, %125 : vector<8x32xf32>
    %128 = arith.divf %126, %127 : vector<8x32xf32>
    %129 = vector.extract_strided_slice %109 {offsets = [0, 64], sizes = [8, 32], strides = [1, 1]} : vector<8x96xf32> to vector<8x32xf32>
    %130 = vector.extract_strided_slice %112 {offsets = [0, 64], sizes = [8, 32], strides = [1, 1]} : vector<8x96xf32> to vector<8x32xf32>
    %131 = arith.mulf %120, %130 : vector<8x32xf32>
    %132 = arith.addf %129, %131 : vector<8x32xf32>
    %133 = math.tanh %132 : vector<8x32xf32>
    %cst_38 = arith.constant 1.000000e+00 : f32
    %134 = vector.broadcast %cst_38 : f32 to vector<8x32xf32>
    %135 = arith.subf %134, %128 : vector<8x32xf32>
    %136 = arith.mulf %135, %133 : vector<8x32xf32>
    %137 = arith.mulf %128, %104 : vector<8x32xf32>
    %138 = arith.addf %136, %137 : vector<8x32xf32>
    %c3_39 = arith.constant 3 : index
    %c0_40 = arith.constant 0 : index
    %c0_41 = arith.constant 0 : index
    %139 = vector.load %arg4[%c3_39, %c0_40, %c0_41] : memref<8x8x32xf32, #tpu.memory_space<vmem>>, vector<1x8x32xf32>
    %140 = vector.shape_cast %139 : vector<1x8x32xf32> to vector<8x32xf32>
    %141 = vector.shape_cast %138 : vector<8x32xf32> to vector<1x8x32xf32>
    tpu.vector_store %arg4[%c3_39, %c0_40, %c0_41], %141 {strides = array<i32>} : memref<8x8x32xf32, #tpu.memory_space<vmem>>, vector<1x8x32xf32>,
    %c4 = arith.constant 4 : index
    %c0_42 = arith.constant 0 : index
    %c0_43 = arith.constant 0 : index
    %142 = vector.load %arg1[%c4, %c0_42, %c0_43] : memref<8x8x96xf32, #tpu.memory_space<vmem>>, vector<1x8x96xf32>
    %143 = vector.shape_cast %142 : vector<1x8x96xf32> to vector<8x96xf32>
    %cst_44 = arith.constant dense<0.000000e+00> : vector<8x96xf32>
    %144 = tpu.matmul %138, %3, %cst_44 {dimension_numbers = #tpu.dot_dimension_numbers<[1], [0], [0], [1], [0, 0, 1, 1], [], []>} : vector<8x32xf32>, vector<32x96xf32>, vector<8x96xf32> -> vector<8x96xf32>
    %145 = vector.broadcast %4 : vector<1x96xf32> to vector<8x96xf32>
    %146 = arith.addf %144, %145 : vector<8x96xf32>
    %147 = vector.extract_strided_slice %143 {offsets = [0, 0], sizes = [8, 32], strides = [1, 1]} : vector<8x96xf32> to vector<8x32xf32>
    %148 = vector.extract_strided_slice %146 {offsets = [0, 0], sizes = [8, 32], strides = [1, 1]} : vector<8x96xf32> to vector<8x32xf32>
    %149 = arith.addf %147, %148 : vector<8x32xf32>
    %150 = arith.negf %149 : vector<8x32xf32>
    %151 = math.exp %150 : vector<8x32xf32>
    %cst_45 = arith.constant 1.000000e+00 : f32
    %152 = vector.broadcast %cst_45 : f32 to vector<8x32xf32>
    %153 = arith.addf %152, %151 : vector<8x32xf32>
    %154 = arith.divf %152, %153 : vector<8x32xf32>
    %155 = vector.extract_strided_slice %143 {offsets = [0, 32], sizes = [8, 32], strides = [1, 1]} : vector<8x96xf32> to vector<8x32xf32>
    %156 = vector.extract_strided_slice %146 {offsets = [0, 32], sizes = [8, 32], strides = [1, 1]} : vector<8x96xf32> to vector<8x32xf32>
    %157 = arith.addf %155, %156 : vector<8x32xf32>
    %158 = arith.negf %157 : vector<8x32xf32>
    %159 = math.exp %158 : vector<8x32xf32>
    %cst_46 = arith.constant 1.000000e+00 : f32
    %160 = vector.broadcast %cst_46 : f32 to vector<8x32xf32>
    %161 = arith.addf %160, %159 : vector<8x32xf32>
    %162 = arith.divf %160, %161 : vector<8x32xf32>
    %163 = vector.extract_strided_slice %143 {offsets = [0, 64], sizes = [8, 32], strides = [1, 1]} : vector<8x96xf32> to vector<8x32xf32>
    %164 = vector.extract_strided_slice %146 {offsets = [0, 64], sizes = [8, 32], strides = [1, 1]} : vector<8x96xf32> to vector<8x32xf32>
    %165 = arith.mulf %154, %164 : vector<8x32xf32>
    %166 = arith.addf %163, %165 : vector<8x32xf32>
    %167 = math.tanh %166 : vector<8x32xf32>
    %cst_47 = arith.constant 1.000000e+00 : f32
    %168 = vector.broadcast %cst_47 : f32 to vector<8x32xf32>
    %169 = arith.subf %168, %162 : vector<8x32xf32>
    %170 = arith.mulf %169, %167 : vector<8x32xf32>
    %171 = arith.mulf %162, %138 : vector<8x32xf32>
    %172 = arith.addf %170, %171 : vector<8x32xf32>
    %c4_48 = arith.constant 4 : index
    %c0_49 = arith.constant 0 : index
    %c0_50 = arith.constant 0 : index
    %173 = vector.load %arg4[%c4_48, %c0_49, %c0_50] : memref<8x8x32xf32, #tpu.memory_space<vmem>>, vector<1x8x32xf32>
    %174 = vector.shape_cast %173 : vector<1x8x32xf32> to vector<8x32xf32>
    %175 = vector.shape_cast %172 : vector<8x32xf32> to vector<1x8x32xf32>
    tpu.vector_store %arg4[%c4_48, %c0_49, %c0_50], %175 {strides = array<i32>} : memref<8x8x32xf32, #tpu.memory_space<vmem>>, vector<1x8x32xf32>,
    %c5 = arith.constant 5 : index
    %c0_51 = arith.constant 0 : index
    %c0_52 = arith.constant 0 : index
    %176 = vector.load %arg1[%c5, %c0_51, %c0_52] : memref<8x8x96xf32, #tpu.memory_space<vmem>>, vector<1x8x96xf32>
    %177 = vector.shape_cast %176 : vector<1x8x96xf32> to vector<8x96xf32>
    %cst_53 = arith.constant dense<0.000000e+00> : vector<8x96xf32>
    %178 = tpu.matmul %172, %3, %cst_53 {dimension_numbers = #tpu.dot_dimension_numbers<[1], [0], [0], [1], [0, 0, 1, 1], [], []>} : vector<8x32xf32>, vector<32x96xf32>, vector<8x96xf32> -> vector<8x96xf32>
    %179 = vector.broadcast %4 : vector<1x96xf32> to vector<8x96xf32>
    %180 = arith.addf %178, %179 : vector<8x96xf32>
    %181 = vector.extract_strided_slice %177 {offsets = [0, 0], sizes = [8, 32], strides = [1, 1]} : vector<8x96xf32> to vector<8x32xf32>
    %182 = vector.extract_strided_slice %180 {offsets = [0, 0], sizes = [8, 32], strides = [1, 1]} : vector<8x96xf32> to vector<8x32xf32>
    %183 = arith.addf %181, %182 : vector<8x32xf32>
    %184 = arith.negf %183 : vector<8x32xf32>
    %185 = math.exp %184 : vector<8x32xf32>
    %cst_54 = arith.constant 1.000000e+00 : f32
    %186 = vector.broadcast %cst_54 : f32 to vector<8x32xf32>
    %187 = arith.addf %186, %185 : vector<8x32xf32>
    %188 = arith.divf %186, %187 : vector<8x32xf32>
    %189 = vector.extract_strided_slice %177 {offsets = [0, 32], sizes = [8, 32], strides = [1, 1]} : vector<8x96xf32> to vector<8x32xf32>
    %190 = vector.extract_strided_slice %180 {offsets = [0, 32], sizes = [8, 32], strides = [1, 1]} : vector<8x96xf32> to vector<8x32xf32>
    %191 = arith.addf %189, %190 : vector<8x32xf32>
    %192 = arith.negf %191 : vector<8x32xf32>
    %193 = math.exp %192 : vector<8x32xf32>
    %cst_55 = arith.constant 1.000000e+00 : f32
    %194 = vector.broadcast %cst_55 : f32 to vector<8x32xf32>
    %195 = arith.addf %194, %193 : vector<8x32xf32>
    %196 = arith.divf %194, %195 : vector<8x32xf32>
    %197 = vector.extract_strided_slice %177 {offsets = [0, 64], sizes = [8, 32], strides = [1, 1]} : vector<8x96xf32> to vector<8x32xf32>
    %198 = vector.extract_strided_slice %180 {offsets = [0, 64], sizes = [8, 32], strides = [1, 1]} : vector<8x96xf32> to vector<8x32xf32>
    %199 = arith.mulf %188, %198 : vector<8x32xf32>
    %200 = arith.addf %197, %199 : vector<8x32xf32>
    %201 = math.tanh %200 : vector<8x32xf32>
    %cst_56 = arith.constant 1.000000e+00 : f32
    %202 = vector.broadcast %cst_56 : f32 to vector<8x32xf32>
    %203 = arith.subf %202, %196 : vector<8x32xf32>
    %204 = arith.mulf %203, %201 : vector<8x32xf32>
    %205 = arith.mulf %196, %172 : vector<8x32xf32>
    %206 = arith.addf %204, %205 : vector<8x32xf32>
    %c5_57 = arith.constant 5 : index
    %c0_58 = arith.constant 0 : index
    %c0_59 = arith.constant 0 : index
    %207 = vector.load %arg4[%c5_57, %c0_58, %c0_59] : memref<8x8x32xf32, #tpu.memory_space<vmem>>, vector<1x8x32xf32>
    %208 = vector.shape_cast %207 : vector<1x8x32xf32> to vector<8x32xf32>
    %209 = vector.shape_cast %206 : vector<8x32xf32> to vector<1x8x32xf32>
    tpu.vector_store %arg4[%c5_57, %c0_58, %c0_59], %209 {strides = array<i32>} : memref<8x8x32xf32, #tpu.memory_space<vmem>>, vector<1x8x32xf32>,
    %c6 = arith.constant 6 : index
    %c0_60 = arith.constant 0 : index
    %c0_61 = arith.constant 0 : index
    %210 = vector.load %arg1[%c6, %c0_60, %c0_61] : memref<8x8x96xf32, #tpu.memory_space<vmem>>, vector<1x8x96xf32>
    %211 = vector.shape_cast %210 : vector<1x8x96xf32> to vector<8x96xf32>
    %cst_62 = arith.constant dense<0.000000e+00> : vector<8x96xf32>
    %212 = tpu.matmul %206, %3, %cst_62 {dimension_numbers = #tpu.dot_dimension_numbers<[1], [0], [0], [1], [0, 0, 1, 1], [], []>} : vector<8x32xf32>, vector<32x96xf32>, vector<8x96xf32> -> vector<8x96xf32>
    %213 = vector.broadcast %4 : vector<1x96xf32> to vector<8x96xf32>
    %214 = arith.addf %212, %213 : vector<8x96xf32>
    %215 = vector.extract_strided_slice %211 {offsets = [0, 0], sizes = [8, 32], strides = [1, 1]} : vector<8x96xf32> to vector<8x32xf32>
    %216 = vector.extract_strided_slice %214 {offsets = [0, 0], sizes = [8, 32], strides = [1, 1]} : vector<8x96xf32> to vector<8x32xf32>
    %217 = arith.addf %215, %216 : vector<8x32xf32>
    %218 = arith.negf %217 : vector<8x32xf32>
    %219 = math.exp %218 : vector<8x32xf32>
    %cst_63 = arith.constant 1.000000e+00 : f32
    %220 = vector.broadcast %cst_63 : f32 to vector<8x32xf32>
    %221 = arith.addf %220, %219 : vector<8x32xf32>
    %222 = arith.divf %220, %221 : vector<8x32xf32>
    %223 = vector.extract_strided_slice %211 {offsets = [0, 32], sizes = [8, 32], strides = [1, 1]} : vector<8x96xf32> to vector<8x32xf32>
    %224 = vector.extract_strided_slice %214 {offsets = [0, 32], sizes = [8, 32], strides = [1, 1]} : vector<8x96xf32> to vector<8x32xf32>
    %225 = arith.addf %223, %224 : vector<8x32xf32>
    %226 = arith.negf %225 : vector<8x32xf32>
    %227 = math.exp %226 : vector<8x32xf32>
    %cst_64 = arith.constant 1.000000e+00 : f32
    %228 = vector.broadcast %cst_64 : f32 to vector<8x32xf32>
    %229 = arith.addf %228, %227 : vector<8x32xf32>
    %230 = arith.divf %228, %229 : vector<8x32xf32>
    %231 = vector.extract_strided_slice %211 {offsets = [0, 64], sizes = [8, 32], strides = [1, 1]} : vector<8x96xf32> to vector<8x32xf32>
    %232 = vector.extract_strided_slice %214 {offsets = [0, 64], sizes = [8, 32], strides = [1, 1]} : vector<8x96xf32> to vector<8x32xf32>
    %233 = arith.mulf %222, %232 : vector<8x32xf32>
    %234 = arith.addf %231, %233 : vector<8x32xf32>
    %235 = math.tanh %234 : vector<8x32xf32>
    %cst_65 = arith.constant 1.000000e+00 : f32
    %236 = vector.broadcast %cst_65 : f32 to vector<8x32xf32>
    %237 = arith.subf %236, %230 : vector<8x32xf32>
    %238 = arith.mulf %237, %235 : vector<8x32xf32>
    %239 = arith.mulf %230, %206 : vector<8x32xf32>
    %240 = arith.addf %238, %239 : vector<8x32xf32>
    %c6_66 = arith.constant 6 : index
    %c0_67 = arith.constant 0 : index
    %c0_68 = arith.constant 0 : index
    %241 = vector.load %arg4[%c6_66, %c0_67, %c0_68] : memref<8x8x32xf32, #tpu.memory_space<vmem>>, vector<1x8x32xf32>
    %242 = vector.shape_cast %241 : vector<1x8x32xf32> to vector<8x32xf32>
    %243 = vector.shape_cast %240 : vector<8x32xf32> to vector<1x8x32xf32>
    tpu.vector_store %arg4[%c6_66, %c0_67, %c0_68], %243 {strides = array<i32>} : memref<8x8x32xf32, #tpu.memory_space<vmem>>, vector<1x8x32xf32>,
    %c7 = arith.constant 7 : index
    %c0_69 = arith.constant 0 : index
    %c0_70 = arith.constant 0 : index
    %244 = vector.load %arg1[%c7, %c0_69, %c0_70] : memref<8x8x96xf32, #tpu.memory_space<vmem>>, vector<1x8x96xf32>
    %245 = vector.shape_cast %244 : vector<1x8x96xf32> to vector<8x96xf32>
    %cst_71 = arith.constant dense<0.000000e+00> : vector<8x96xf32>
    %246 = tpu.matmul %240, %3, %cst_71 {dimension_numbers = #tpu.dot_dimension_numbers<[1], [0], [0], [1], [0, 0, 1, 1], [], []>} : vector<8x32xf32>, vector<32x96xf32>, vector<8x96xf32> -> vector<8x96xf32>
    %247 = vector.broadcast %4 : vector<1x96xf32> to vector<8x96xf32>
    %248 = arith.addf %246, %247 : vector<8x96xf32>
    %249 = vector.extract_strided_slice %245 {offsets = [0, 0], sizes = [8, 32], strides = [1, 1]} : vector<8x96xf32> to vector<8x32xf32>
    %250 = vector.extract_strided_slice %248 {offsets = [0, 0], sizes = [8, 32], strides = [1, 1]} : vector<8x96xf32> to vector<8x32xf32>
    %251 = arith.addf %249, %250 : vector<8x32xf32>
    %252 = arith.negf %251 : vector<8x32xf32>
    %253 = math.exp %252 : vector<8x32xf32>
    %cst_72 = arith.constant 1.000000e+00 : f32
    %254 = vector.broadcast %cst_72 : f32 to vector<8x32xf32>
    %255 = arith.addf %254, %253 : vector<8x32xf32>
    %256 = arith.divf %254, %255 : vector<8x32xf32>
    %257 = vector.extract_strided_slice %245 {offsets = [0, 32], sizes = [8, 32], strides = [1, 1]} : vector<8x96xf32> to vector<8x32xf32>
    %258 = vector.extract_strided_slice %248 {offsets = [0, 32], sizes = [8, 32], strides = [1, 1]} : vector<8x96xf32> to vector<8x32xf32>
    %259 = arith.addf %257, %258 : vector<8x32xf32>
    %260 = arith.negf %259 : vector<8x32xf32>
    %261 = math.exp %260 : vector<8x32xf32>
    %cst_73 = arith.constant 1.000000e+00 : f32
    %262 = vector.broadcast %cst_73 : f32 to vector<8x32xf32>
    %263 = arith.addf %262, %261 : vector<8x32xf32>
    %264 = arith.divf %262, %263 : vector<8x32xf32>
    %265 = vector.extract_strided_slice %245 {offsets = [0, 64], sizes = [8, 32], strides = [1, 1]} : vector<8x96xf32> to vector<8x32xf32>
    %266 = vector.extract_strided_slice %248 {offsets = [0, 64], sizes = [8, 32], strides = [1, 1]} : vector<8x96xf32> to vector<8x32xf32>
    %267 = arith.mulf %256, %266 : vector<8x32xf32>
    %268 = arith.addf %265, %267 : vector<8x32xf32>
    %269 = math.tanh %268 : vector<8x32xf32>
    %cst_74 = arith.constant 1.000000e+00 : f32
    %270 = vector.broadcast %cst_74 : f32 to vector<8x32xf32>
    %271 = arith.subf %270, %264 : vector<8x32xf32>
    %272 = arith.mulf %271, %269 : vector<8x32xf32>
    %273 = arith.mulf %264, %240 : vector<8x32xf32>
    %274 = arith.addf %272, %273 : vector<8x32xf32>
    %c7_75 = arith.constant 7 : index
    %c0_76 = arith.constant 0 : index
    %c0_77 = arith.constant 0 : index
    %275 = vector.load %arg4[%c7_75, %c0_76, %c0_77] : memref<8x8x32xf32, #tpu.memory_space<vmem>>, vector<1x8x32xf32>
    %276 = vector.shape_cast %275 : vector<1x8x32xf32> to vector<8x32xf32>
    %277 = vector.shape_cast %274 : vector<8x32xf32> to vector<1x8x32xf32>
    tpu.vector_store %arg4[%c7_75, %c0_76, %c0_77], %277 {strides = array<i32>} : memref<8x8x32xf32, #tpu.memory_space<vmem>>, vector<1x8x32xf32>,
    %c0_78 = arith.constant 0 : index
    %c0_79 = arith.constant 0 : index
    %278 = vector.load %arg6[%c0_78, %c0_79] : memref<8x32xf32, #tpu.memory_space<vmem>>, vector<8x32xf32>
    tpu.vector_store %arg6[%c0_78, %c0_79], %274 {strides = array<i32>} : memref<8x32xf32, #tpu.memory_space<vmem>>, vector<8x32xf32>,
    %c0_i32_80 = arith.constant 0 : i32
    %279 = arith.cmpi eq, %arg0, %c0_i32_80 : i32
    %280 = arith.extui %279 : i1 to i32
    %c0_i32_81 = arith.constant 0 : i32
    %281 = arith.cmpi ne, %280, %c0_i32_81 : i32
    scf.if %281 {
      %c0_82 = arith.constant 0 : index
      %c0_83 = arith.constant 0 : index
      %282 = vector.load %arg5[%c0_82, %c0_83] : memref<8x32xf32, #tpu.memory_space<vmem>>, vector<8x32xf32>
      tpu.vector_store %arg5[%c0_82, %c0_83], %274 {strides = array<i32>} : memref<8x32xf32, #tpu.memory_space<vmem>>, vector<8x32xf32>,
    } else {
    }
    return
  }
  func.func @transform_0(%arg0: i32) -> (i32, i32, i32) {
    %c0_i32 = arith.constant 0 : i32
    %c0_i32_0 = arith.constant 0 : i32
    %c0_i32_1 = arith.constant 0 : i32
    return %arg0, %c0_i32, %c0_i32_0 : i32, i32, i32
  }
  func.func @transform_1(%arg0: i32) -> (i32, i32) {
    %c0_i32 = arith.constant 0 : i32
    %c0_i32_0 = arith.constant 0 : i32
    %c0_i32_1 = arith.constant 0 : i32
    return %c0_i32, %c0_i32_0 : i32, i32
  }
  func.func @transform_2(%arg0: i32) -> (i32, i32) {
    %c0_i32 = arith.constant 0 : i32
    %c0_i32_0 = arith.constant 0 : i32
    %c0_i32_1 = arith.constant 0 : i32
    return %c0_i32, %c0_i32_0 : i32, i32
  }
  func.func @transform_3(%arg0: i32) -> (i32, i32, i32) {
    %c0_i32 = arith.constant 0 : i32
    %c0_i32_0 = arith.constant 0 : i32
    %c0_i32_1 = arith.constant 0 : i32
    return %arg0, %c0_i32, %c0_i32_0 : i32, i32, i32
  }
  func.func @transform_4(%arg0: i32) -> (i32, i32) {
    %c0_i32 = arith.constant 0 : i32
    %c0_i32_0 = arith.constant 0 : i32
    %c0_i32_1 = arith.constant 0 : i32
    return %c0_i32, %c0_i32_0 : i32, i32
  }
}

</mosaic_0001>

<llo_original>
// kernel: linear_rnn_base_forward.2
$region0: #{linear_rnn_base_forward.2}
  #allocation0 [shape = 'u32[]', space=smem, size = 0x4, offset = 0x4, fixed_abs, tag = 'smem constant byte address 0x4 - core index']
  #allocation1 [shape = 'u32[144,128]{1,0:T(1,128)}', space=vmem, size = 0x12000, scoped, tag = 'internal scratch']
  #allocation2 [shape = 'f32[8,32]{1,0:T(8,128)}', space=vmem, size = 0x1000, scoped, tag = 'scratch operand']
  %s0 = inlined_call_operand.vmem [shape: f32[8,8,96], index: 0, kind: input, shape index: {}]
  %s1 = inlined_call_operand.vmem [shape: f32[32,96], index: 1, kind: input, shape index: {}]
  %s2 = inlined_call_operand.vmem [shape: f32[1,96], index: 2, kind: input, shape index: {}]
  %s3 = inlined_call_operand.vmem [shape: f32[8,8,32], index: 3, kind: output, shape index: {0}]
  %s4 = inlined_call_operand.hbm [shape: f32[8,32], index: 4, kind: output, shape index: {1}]
  %5 = xla_tuple %s3, %s4
  %s6 = sld [smem:[#allocation0]]
  $region38: #{linear_rnn_base_forward.2} parent=0
    _
  %s8 = ssub.s32 1, %s6
  %s9 = scalar_select 0, %s8, %s6
  $region1: #{linear_rnn_base_forward.2} parent=0
    #allocation3 [shape = 'u8[4096]{0}', space=vmem, size = 0x1000, scoped, tag = 'output window, operand 1, single buffered']
    #allocation4 [shape = 's32[1]{0}', space=sflag, size = 0x4, scoped, tag = 'scoped memory for linear_rnn_base_forward.2']
    %10 = vsyncpa [#allocation4], 0
    // Predicated region
    $region2: #{linear_rnn_base_forward.2} parent=1 // pred_check
      _
    $region3: #{linear_rnn_base_forward.2} parent=1 // pred_check_branch
      %12 = sbr.rel (0) target = $region5
    $region4: #{linear_rnn_base_forward.2} parent=1 // pred_region
      _
    $region5: #{linear_rnn_base_forward.2} parent=1 // pred_fallthru
      _
    // Predicated region
    $region6: #{linear_rnn_base_forward.2} parent=1 // pred_check
      _
    $region7: #{linear_rnn_base_forward.2} parent=1 // pred_check_branch
      %14 = sbr.rel (0) target = $region9
    $region8: #{linear_rnn_base_forward.2} parent=1 // pred_region
      _
    $region9: #{linear_rnn_base_forward.2} parent=1 // pred_fallthru
      _
    // Predicated region
    $region10: #{linear_rnn_base_forward.2} parent=1 // pred_check
      _
    $region11: #{linear_rnn_base_forward.2} parent=1 // pred_check_branch
      %16 = sbr.rel (0) target = $region13
    $region12: #{linear_rnn_base_forward.2} parent=1 // pred_region
      _
    $region13: #{linear_rnn_base_forward.2} parent=1 // pred_fallthru
      _
    %p17 = scmp.eq.s32.totalorder 0, 0
    // Predicated region
    $region14: #{linear_rnn_base_forward.2} parent=1 // pred_check
      %p18 = pneg %p17
    $region15: #{linear_rnn_base_forward.2} parent=1 // pred_check_branch
      %20 = sbr.rel (%p18) target = $region17
    $region16: #{linear_rnn_base_forward.2} parent=1 // pred_region
      %vm21 = vcmask 261120
      %22 = vst.msk [vmem:[#allocation2] sm:$0xff] %vm21, 0.0
    $region17: #{linear_rnn_base_forward.2} parent=1 // pred_fallthru
      _
    %v23 = vld [vmem:[%s1] sm:$0xff]
    %v24 = vld [vmem:[%s1 + $0x8] sm:$0xff]
    %v25 = vld [vmem:[%s1 + $0x10] sm:$0xff]
    %v26 = vld [vmem:[%s1 + $0x18] sm:$0xff]
    %v27 = vld [vmem:[%s2] sm:$0x1]
    %v28 = vld [vmem:[#allocation2] sm:$0xff]
    %v29 = vld [vmem:[%s0] sm:$0xff]
    %v31 = vlaneseq
    %v32 = vshrl.u32 %v31, 7
    %v33 = vsub.s32 0, %v32
    %v34 = vrot.slane %v27, %v33
    %vm36 = vcmask 261120
    %v38 = vsel %vm36, %v28, 0
    %40 = vmatprep.subr.mxu0 0.0
    %41 = vmatpush1.msra.mxu0 %v23
    %42 = vmatprep.subr.mxu0 0.0
    %43 = vmatpush1.msra.mxu0 %v24
    %44 = vmatprep.subr.mxu0 0.0
    %45 = vmatpush1.msra.mxu0 %v25
    %46 = vmatprep.subr.mxu0 0.0
    %47 = vmatpush1.msra.mxu0 %v26
    %48 = vmatprep.subr.mxu0 0.0
    %49 = vmatpush1.msra.mxu0 0.0
    %50 = vmatprep.subr.mxu0 0.0
    %51 = vmatpush1.msra.mxu0 0.0
    %52 = vmatprep.subr.mxu0 0.0
    %53 = vmatpush1.msra.mxu0 0.0
    %54 = vmatprep.subr.mxu0 0.0
    %55 = vmatpush1.msra.mxu0 0.0
    %56 = vmatprep.subr.mxu0 0.0
    %57 = vmatpush1.msra.mxu0 0.0
    %58 = vmatprep.subr.mxu0 0.0
    %59 = vmatpush1.msra.mxu0 0.0
    %60 = vmatprep.subr.mxu0 0.0
    %61 = vmatpush1.msra.mxu0 0.0
    %62 = vmatprep.subr.mxu0 0.0
    %63 = vmatpush1.msra.mxu0 0.0
    %64 = vmatprep.subr.mxu0 0.0
    %65 = vmatpush1.msra.mxu0 0.0
    %66 = vmatprep.subr.mxu0 0.0
    %67 = vmatpush1.msra.mxu0 0.0
    %68 = vmatprep.subr.mxu0 0.0
    %69 = vmatpush1.msra.mxu0 0.0
    %70 = vmatprep.subr.mxu0 0.0
    %71 = vmatpush1.msra.mxu0 0.0
    %72 = vmatprep.subr.mxu0 0.0
    %73 = vmatpush1.msra.mxu0 0.0
    %74 = vmatprep.subr.mxu0 0.0
    %75 = vmatpush1.msra.mxu0 0.0
    %76 = vmatprep.subr.mxu0 0.0
    %77 = vmatpush1.msra.mxu0 0.0
    %78 = vmatprep.subr.mxu0 0.0
    %79 = vmatpush1.msra.mxu0 0.0
    %80 = vmatprep.subr.mxu0 0.0
    %81 = vmatpush1.msra.mxu0 0.0
    %82 = vmatprep.subr.mxu0 0.0
    %83 = vmatpush1.msra.mxu0 0.0
    %84 = vmatprep.subr.mxu0 0.0
    %85 = vmatpush1.msra.mxu0 0.0
    %86 = vmatprep.subr.mxu0 0.0
    %87 = vmatpush1.msra.mxu0 0.0
    %88 = vmatprep.subr.mxu0 0.0
    %89 = vmatpush1.msra.mxu0 0.0
    %90 = vmatprep.subr.mxu0 0.0
    %91 = vmatpush1.msra.mxu0 0.0
    %92 = vmatprep.subr.mxu0 0.0
    %93 = vmatpush1.msra.mxu0 0.0
    %94 = vmatprep.subr.mxu0 0.0
    %95 = vmatpush1.msra.mxu0 0.0
    %96 = vmatprep.subr.mxu0 0.0
    %97 = vmatpush1.msra.mxu0 0.0
    %98 = vmatprep.subr.mxu0 0.0
    %99 = vmatpush1.msra.mxu0 0.0
    %100 = vmatprep.subr.mxu0 0.0
    %101 = vmatpush1.msra.mxu0 0.0
    %102 = vmatprep.subr.mxu0 0.0
    %103 = vmatpush1.msra.mxu0 0.0
    %104 = vmatprep.mubr.f32.mxu0 0.0
    %105 = vmatmul.mubr.f32.gmra.mrb[0].mxu0 %v38
    %v106 = vpop.f32.mrb[0].mxu0
    %v107 = vadd.f32 %v34, %v106
    %v108 = vpop.f32.mrb[0].mxu0
    %109 = vdwg.mxu0
    %v110 = vadd.f32 %v29, %v107
    %v111 = vxor.u32 %v110, 2147483648
    %v112 = vmul.f32 %v111, 1.442695
    %v113 = vpow.pop %v112
    %v114 = vadd.f32 %v113, 1.0
    %v115 = vrcp.pop %v114
    %v116 = vmul.f32 1.0, %v115
    %118 = vrot.lane.b32.xlu0 %v107, 64
    %v119 = vpop.permute.xlu0 %118
    %v121 = vmul.f32 %v116, %v119
    %123 = vrot.lane.b32.xlu0 %v121, 64
    %v124 = vpop.permute.xlu0 %123
    %v126 = vadd.f32 %v29, %v124
    %v127 = vtanh.pop %v126
    %v128 = vsub.f32 1.0, %v116
    %130 = vrot.lane.b32.xlu0 %v127, 96
    %v131 = vpop.permute.xlu0 %130
    %v133 = vmul.f32 %v128, %v131
    %134 = vrot.lane.b32.xlu0 %v28, 32
    %v135 = vpop.permute.xlu0 %134
    %v137 = vmul.f32 %v116, %v135
    %v138 = vadd.f32 %v133, %v137
    %140 = vrot.lane.b32.xlu0 %v138, 96
    %v141 = vpop.permute.xlu0 %140
    %143 = vst.msk [vmem:[%s3] sm:$0xff] %vm36, %v141
    %s144 = scalar_lea.vmem %s0, 8
    %v145 = vld [vmem:[%s144] sm:$0xff]
    %v146 = vsel %vm36, %v141, 0
    %148 = vmatprep.subr.mxu0 0.0
    %149 = vmatpush1.msra.mxu0 %v23
    %150 = vmatprep.subr.mxu0 0.0
    %151 = vmatpush1.msra.mxu0 %v24
    %152 = vmatprep.subr.mxu0 0.0
    %153 = vmatpush1.msra.mxu0 %v25
    %154 = vmatprep.subr.mxu0 0.0
    %155 = vmatpush1.msra.mxu0 %v26
    %156 = vmatprep.subr.mxu0 0.0
    %157 = vmatpush1.msra.mxu0 0.0
    %158 = vmatprep.subr.mxu0 0.0
    %159 = vmatpush1.msra.mxu0 0.0
    %160 = vmatprep.subr.mxu0 0.0
    %161 = vmatpush1.msra.mxu0 0.0
    %162 = vmatprep.subr.mxu0 0.0
    %163 = vmatpush1.msra.mxu0 0.0
    %164 = vmatprep.subr.mxu0 0.0
    %165 = vmatpush1.msra.mxu0 0.0
    %166 = vmatprep.subr.mxu0 0.0
    %167 = vmatpush1.msra.mxu0 0.0
    %168 = vmatprep.subr.mxu0 0.0
    %169 = vmatpush1.msra.mxu0 0.0
    %170 = vmatprep.subr.mxu0 0.0
    %171 = vmatpush1.msra.mxu0 0.0
    %172 = vmatprep.subr.mxu0 0.0
    %173 = vmatpush1.msra.mxu0 0.0
    %174 = vmatprep.subr.mxu0 0.0
    %175 = vmatpush1.msra.mxu0 0.0
    %176 = vmatprep.subr.mxu0 0.0
    %177 = vmatpush1.msra.mxu0 0.0
    %178 = vmatprep.subr.mxu0 0.0
    %179 = vmatpush1.msra.mxu0 0.0
    %180 = vmatprep.subr.mxu0 0.0
    %181 = vmatpush1.msra.mxu0 0.0
    %182 = vmatprep.subr.mxu0 0.0
    %183 = vmatpush1.msra.mxu0 0.0
    %184 = vmatprep.subr.mxu0 0.0
    %185 = vmatpush1.msra.mxu0 0.0
    %186 = vmatprep.subr.mxu0 0.0
    %187 = vmatpush1.msra.mxu0 0.0
    %188 = vmatprep.subr.mxu0 0.0
    %189 = vmatpush1.msra.mxu0 0.0
    %190 = vmatprep.subr.mxu0 0.0
    %191 = vmatpush1.msra.mxu0 0.0
    %192 = vmatprep.subr.mxu0 0.0
    %193 = vmatpush1.msra.mxu0 0.0
    %194 = vmatprep.subr.mxu0 0.0
    %195 = vmatpush1.msra.mxu0 0.0
    %196 = vmatprep.subr.mxu0 0.0
    %197 = vmatpush1.msra.mxu0 0.0
    %198 = vmatprep.subr.mxu0 0.0
    %199 = vmatpush1.msra.mxu0 0.0
    %200 = vmatprep.subr.mxu0 0.0
    %201 = vmatpush1.msra.mxu0 0.0
    %202 = vmatprep.subr.mxu0 0.0
    %203 = vmatpush1.msra.mxu0 0.0
    %204 = vmatprep.subr.mxu0 0.0
    %205 = vmatpush1.msra.mxu0 0.0
    %206 = vmatprep.subr.mxu0 0.0
    %207 = vmatpush1.msra.mxu0 0.0
    %208 = vmatprep.subr.mxu0 0.0
    %209 = vmatpush1.msra.mxu0 0.0
    %210 = vmatprep.subr.mxu0 0.0
    %211 = vmatpush1.msra.mxu0 0.0
    %212 = vmatprep.mubr.f32.mxu0 0.0
    %213 = vmatmul.mubr.f32.gmra.mrb[0].mxu0 %v146
    %v214 = vpop.f32.mrb[0].mxu0
    %v215 = vadd.f32 %v34, %v214
    %v216 = vpop.f32.mrb[0].mxu0
    %217 = vdwg.mxu0
    %v218 = vadd.f32 %v145, %v215
    %v219 = vxor.u32 %v218, 2147483648
    %v220 = vmul.f32 %v219, 1.442695
    %v221 = vpow.pop %v220
    %v222 = vadd.f32 %v221, 1.0
    %v223 = vrcp.pop %v222
    %v224 = vmul.f32 1.0, %v223
    %226 = vrot.lane.b32.xlu0 %v215, 64
    %v227 = vpop.permute.xlu0 %226
    %v229 = vmul.f32 %v224, %v227
    %231 = vrot.lane.b32.xlu0 %v229, 64
    %v232 = vpop.permute.xlu0 %231
    %v234 = vadd.f32 %v145, %v232
    %v235 = vtanh.pop %v234
    %v236 = vsub.f32 1.0, %v224
    %238 = vrot.lane.b32.xlu0 %v235, 96
    %v239 = vpop.permute.xlu0 %238
    %v241 = vmul.f32 %v236, %v239
    %v242 = vmul.f32 %v224, %v138
    %v243 = vadd.f32 %v241, %v242
    %245 = vrot.lane.b32.xlu0 %v243, 96
    %v246 = vpop.permute.xlu0 %245
    %s248 = scalar_lea.vmem %s3, 8
    %249 = vst.msk [vmem:[%s248] sm:$0xff] %vm36, %v246
    %s250 = scalar_lea.vmem %s0, 16
    %v251 = vld [vmem:[%s250] sm:$0xff]
    %v252 = vsel %vm36, %v246, 0
    %254 = vmatprep.subr.mxu0 0.0
    %255 = vmatpush1.msra.mxu0 %v23
    %256 = vmatprep.subr.mxu0 0.0
    %257 = vmatpush1.msra.mxu0 %v24
    %258 = vmatprep.subr.mxu0 0.0
    %259 = vmatpush1.msra.mxu0 %v25
    %260 = vmatprep.subr.mxu0 0.0
    %261 = vmatpush1.msra.mxu0 %v26
    %262 = vmatprep.subr.mxu0 0.0
    %263 = vmatpush1.msra.mxu0 0.0
    %264 = vmatprep.subr.mxu0 0.0
    %265 = vmatpush1.msra.mxu0 0.0
    %266 = vmatprep.subr.mxu0 0.0
    %267 = vmatpush1.msra.mxu0 0.0
    %268 = vmatprep.subr.mxu0 0.0
    %269 = vmatpush1.msra.mxu0 0.0
    %270 = vmatprep.subr.mxu0 0.0
    %271 = vmatpush1.msra.mxu0 0.0
    %272 = vmatprep.subr.mxu0 0.0
    %273 = vmatpush1.msra.mxu0 0.0
    %274 = vmatprep.subr.mxu0 0.0
    %275 = vmatpush1.msra.mxu0 0.0
    %276 = vmatprep.subr.mxu0 0.0
    %277 = vmatpush1.msra.mxu0 0.0
    %278 = vmatprep.subr.mxu0 0.0
    %279 = vmatpush1.msra.mxu0 0.0
    %280 = vmatprep.subr.mxu0 0.0
    %281 = vmatpush1.msra.mxu0 0.0
    %282 = vmatprep.subr.mxu0 0.0
    %283 = vmatpush1.msra.mxu0 0.0
    %284 = vmatprep.subr.mxu0 0.0
    %285 = vmatpush1.msra.mxu0 0.0
    %286 = vmatprep.subr.mxu0 0.0
    %287 = vmatpush1.msra.mxu0 0.0
    %288 = vmatprep.subr.mxu0 0.0
    %289 = vmatpush1.msra.mxu0 0.0
    %290 = vmatprep.subr.mxu0 0.0
    %291 = vmatpush1.msra.mxu0 0.0
    %292 = vmatprep.subr.mxu0 0.0
    %293 = vmatpush1.msra.mxu0 0.0
    %294 = vmatprep.subr.mxu0 0.0
    %295 = vmatpush1.msra.mxu0 0.0
    %296 = vmatprep.subr.mxu0 0.0
    %297 = vmatpush1.msra.mxu0 0.0
    %298 = vmatprep.subr.mxu0 0.0
    %299 = vmatpush1.msra.mxu0 0.0
    %300 = vmatprep.subr.mxu0 0.0
    %301 = vmatpush1.msra.mxu0 0.0
    %302 = vmatprep.subr.mxu0 0.0
    %303 = vmatpush1.msra.mxu0 0.0
    %304 = vmatprep.subr.mxu0 0.0
    %305 = vmatpush1.msra.mxu0 0.0
    %306 = vmatprep.subr.mxu0 0.0
    %307 = vmatpush1.msra.mxu0 0.0
    %308 = vmatprep.subr.mxu0 0.0
    %309 = vmatpush1.msra.mxu0 0.0
    %310 = vmatprep.subr.mxu0 0.0
    %311 = vmatpush1.msra.mxu0 0.0
    %312 = vmatprep.subr.mxu0 0.0
    %313 = vmatpush1.msra.mxu0 0.0
    %314 = vmatprep.subr.mxu0 0.0
    %315 = vmatpush1.msra.mxu0 0.0
    %316 = vmatprep.subr.mxu0 0.0
    %317 = vmatpush1.msra.mxu0 0.0
    %318 = vmatprep.mubr.f32.mxu0 0.0
    %319 = vmatmul.mubr.f32.gmra.mrb[0].mxu0 %v252
    %v320 = vpop.f32.mrb[0].mxu0
    %v321 = vadd.f32 %v34, %v320
    %v322 = vpop.f32.mrb[0].mxu0
    %323 = vdwg.mxu0
    %v324 = vadd.f32 %v251, %v321
    %v325 = vxor.u32 %v324, 2147483648
    %v326 = vmul.f32 %v325, 1.442695
    %v327 = vpow.pop %v326
    %v328 = vadd.f32 %v327, 1.0
    %v329 = vrcp.pop %v328
    %v330 = vmul.f32 1.0, %v329
    %332 = vrot.lane.b32.xlu0 %v321, 64
    %v333 = vpop.permute.xlu0 %332
    %v335 = vmul.f32 %v330, %v333
    %337 = vrot.lane.b32.xlu0 %v335, 64
    %v338 = vpop.permute.xlu0 %337
    %v340 = vadd.f32 %v251, %v338
    %v341 = vtanh.pop %v340
    %v342 = vsub.f32 1.0, %v330
    %344 = vrot.lane.b32.xlu0 %v341, 96
    %v345 = vpop.permute.xlu0 %344
    %v347 = vmul.f32 %v342, %v345
    %v348 = vmul.f32 %v330, %v243
    %v349 = vadd.f32 %v347, %v348
    %351 = vrot.lane.b32.xlu0 %v349, 96
    %v352 = vpop.permute.xlu0 %351
    %s354 = scalar_lea.vmem %s3, 16
    %355 = vst.msk [vmem:[%s354] sm:$0xff] %vm36, %v352
    %s356 = scalar_lea.vmem %s0, 24
    %v357 = vld [vmem:[%s356] sm:$0xff]
    %v358 = vsel %vm36, %v352, 0
    %360 = vmatprep.subr.mxu0 0.0
    %361 = vmatpush1.msra.mxu0 %v23
    %362 = vmatprep.subr.mxu0 0.0
    %363 = vmatpush1.msra.mxu0 %v24
    %364 = vmatprep.subr.mxu0 0.0
    %365 = vmatpush1.msra.mxu0 %v25
    %366 = vmatprep.subr.mxu0 0.0
    %367 = vmatpush1.msra.mxu0 %v26
    %368 = vmatprep.subr.mxu0 0.0
    %369 = vmatpush1.msra.mxu0 0.0
    %370 = vmatprep.subr.mxu0 0.0
    %371 = vmatpush1.msra.mxu0 0.0
    %372 = vmatprep.subr.mxu0 0.0
    %373 = vmatpush1.msra.mxu0 0.0
    %374 = vmatprep.subr.mxu0 0.0
    %375 = vmatpush1.msra.mxu0 0.0
    %376 = vmatprep.subr.mxu0 0.0
    %377 = vmatpush1.msra.mxu0 0.0
    %378 = vmatprep.subr.mxu0 0.0
    %379 = vmatpush1.msra.mxu0 0.0
    %380 = vmatprep.subr.mxu0 0.0
    %381 = vmatpush1.msra.mxu0 0.0
    %382 = vmatprep.subr.mxu0 0.0
    %383 = vmatpush1.msra.mxu0 0.0
    %384 = vmatprep.subr.mxu0 0.0
    %385 = vmatpush1.msra.mxu0 0.0
    %386 = vmatprep.subr.mxu0 0.0
    %387 = vmatpush1.msra.mxu0 0.0
    %388 = vmatprep.subr.mxu0 0.0
    %389 = vmatpush1.msra.mxu0 0.0
    %390 = vmatprep.subr.mxu0 0.0
    %391 = vmatpush1.msra.mxu0 0.0
    %392 = vmatprep.subr.mxu0 0.0
    %393 = vmatpush1.msra.mxu0 0.0
    %394 = vmatprep.subr.mxu0 0.0
    %395 = vmatpush1.msra.mxu0 0.0
    %396 = vmatprep.subr.mxu0 0.0
    %397 = vmatpush1.msra.mxu0 0.0
    %398 = vmatprep.subr.mxu0 0.0
    %399 = vmatpush1.msra.mxu0 0.0
    %400 = vmatprep.subr.mxu0 0.0
    %401 = vmatpush1.msra.mxu0 0.0
    %402 = vmatprep.subr.mxu0 0.0
    %403 = vmatpush1.msra.mxu0 0.0
    %404 = vmatprep.subr.mxu0 0.0
    %405 = vmatpush1.msra.mxu0 0.0
    %406 = vmatprep.subr.mxu0 0.0
    %407 = vmatpush1.msra.mxu0 0.0
    %408 = vmatprep.subr.mxu0 0.0
    %409 = vmatpush1.msra.mxu0 0.0
    %410 = vmatprep.subr.mxu0 0.0
    %411 = vmatpush1.msra.mxu0 0.0
    %412 = vmatprep.subr.mxu0 0.0
    %413 = vmatpush1.msra.mxu0 0.0
    %414 = vmatprep.subr.mxu0 0.0
    %415 = vmatpush1.msra.mxu0 0.0
    %416 = vmatprep.subr.mxu0 0.0
    %417 = vmatpush1.msra.mxu0 0.0
    %418 = vmatprep.subr.mxu0 0.0
    %419 = vmatpush1.msra.mxu0 0.0
    %420 = vmatprep.subr.mxu0 0.0
    %421 = vmatpush1.msra.mxu0 0.0
    %422 = vmatprep.subr.mxu0 0.0
    %423 = vmatpush1.msra.mxu0 0.0
    %424 = vmatprep.mubr.f32.mxu0 0.0
    %425 = vmatmul.mubr.f32.gmra.mrb[0].mxu0 %v358
    %v426 = vpop.f32.mrb[0].mxu0
    %v427 = vadd.f32 %v34, %v426
    %v428 = vpop.f32.mrb[0].mxu0
    %429 = vdwg.mxu0
    %v430 = vadd.f32 %v357, %v427
    %v431 = vxor.u32 %v430, 2147483648
    %v432 = vmul.f32 %v431, 1.442695
    %v433 = vpow.pop %v432
    %v434 = vadd.f32 %v433, 1.0
    %v435 = vrcp.pop %v434
    %v436 = vmul.f32 1.0, %v435
    %438 = vrot.lane.b32.xlu0 %v427, 64
    %v439 = vpop.permute.xlu0 %438
    %v441 = vmul.f32 %v436, %v439
    %443 = vrot.lane.b32.xlu0 %v441, 64
    %v444 = vpop.permute.xlu0 %443
    %v446 = vadd.f32 %v357, %v444
    %v447 = vtanh.pop %v446
    %v448 = vsub.f32 1.0, %v436
    %450 = vrot.lane.b32.xlu0 %v447, 96
    %v451 = vpop.permute.xlu0 %450
    %v453 = vmul.f32 %v448, %v451
    %v454 = vmul.f32 %v436, %v349
    %v455 = vadd.f32 %v453, %v454
    %457 = vrot.lane.b32.xlu0 %v455, 96
    %v458 = vpop.permute.xlu0 %457
    %s460 = scalar_lea.vmem %s3, 24
    %461 = vst.msk [vmem:[%s460] sm:$0xff] %vm36, %v458
    %s462 = scalar_lea.vmem %s0, 32
    %v463 = vld [vmem:[%s462] sm:$0xff]
    %v464 = vsel %vm36, %v458, 0
    %466 = vmatprep.subr.mxu0 0.0
    %467 = vmatpush1.msra.mxu0 %v23
    %468 = vmatprep.subr.mxu0 0.0
    %469 = vmatpush1.msra.mxu0 %v24
    %470 = vmatprep.subr.mxu0 0.0
    %471 = vmatpush1.msra.mxu0 %v25
    %472 = vmatprep.subr.mxu0 0.0
    %473 = vmatpush1.msra.mxu0 %v26
    %474 = vmatprep.subr.mxu0 0.0
    %475 = vmatpush1.msra.mxu0 0.0
    %476 = vmatprep.subr.mxu0 0.0
    %477 = vmatpush1.msra.mxu0 0.0
    %478 = vmatprep.subr.mxu0 0.0
    %479 = vmatpush1.msra.mxu0 0.0
    %480 = vmatprep.subr.mxu0 0.0
    %481 = vmatpush1.msra.mxu0 0.0
    %482 = vmatprep.subr.mxu0 0.0
    %483 = vmatpush1.msra.mxu0 0.0
    %484 = vmatprep.subr.mxu0 0.0
    %485 = vmatpush1.msra.mxu0 0.0
    %486 = vmatprep.subr.mxu0 0.0
    %487 = vmatpush1.msra.mxu0 0.0
    %488 = vmatprep.subr.mxu0 0.0
    %489 = vmatpush1.msra.mxu0 0.0
    %490 = vmatprep.subr.mxu0 0.0
    %491 = vmatpush1.msra.mxu0 0.0
    %492 = vmatprep.subr.mxu0 0.0
    %493 = vmatpush1.msra.mxu0 0.0
    %494 = vmatprep.subr.mxu0 0.0
    %495 = vmatpush1.msra.mxu0 0.0
    %496 = vmatprep.subr.mxu0 0.0
    %497 = vmatpush1.msra.mxu0 0.0
    %498 = vmatprep.subr.mxu0 0.0
    %499 = vmatpush1.msra.mxu0 0.0
    %500 = vmatprep.subr.mxu0 0.0
    %501 = vmatpush1.msra.mxu0 0.0
    %502 = vmatprep.subr.mxu0 0.0
    %503 = vmatpush1.msra.mxu0 0.0
    %504 = vmatprep.subr.mxu0 0.0
    %505 = vmatpush1.msra.mxu0 0.0
    %506 = vmatprep.subr.mxu0 0.0
    %507 = vmatpush1.msra.mxu0 0.0
    %508 = vmatprep.subr.mxu0 0.0
    %509 = vmatpush1.msra.mxu0 0.0
    %510 = vmatprep.subr.mxu0 0.0
    %511 = vmatpush1.msra.mxu0 0.0
    %512 = vmatprep.subr.mxu0 0.0
    %513 = vmatpush1.msra.mxu0 0.0
    %514 = vmatprep.subr.mxu0 0.0
    %515 = vmatpush1.msra.mxu0 0.0
    %516 = vmatprep.subr.mxu0 0.0
    %517 = vmatpush1.msra.mxu0 0.0
    %518 = vmatprep.subr.mxu0 0.0
    %519 = vmatpush1.msra.mxu0 0.0
    %520 = vmatprep.subr.mxu0 0.0
    %521 = vmatpush1.msra.mxu0 0.0
    %522 = vmatprep.subr.mxu0 0.0
    %523 = vmatpush1.msra.mxu0 0.0
    %524 = vmatprep.subr.mxu0 0.0
    %525 = vmatpush1.msra.mxu0 0.0
    %526 = vmatprep.subr.mxu0 0.0
    %527 = vmatpush1.msra.mxu0 0.0
    %528 = vmatprep.subr.mxu0 0.0
    %529 = vmatpush1.msra.mxu0 0.0
    %530 = vmatprep.mubr.f32.mxu0 0.0
    %531 = vmatmul.mubr.f32.gmra.mrb[0].mxu0 %v464
    %v532 = vpop.f32.mrb[0].mxu0
    %v533 = vadd.f32 %v34, %v532
    %v534 = vpop.f32.mrb[0].mxu0
    %535 = vdwg.mxu0
    %v536 = vadd.f32 %v463, %v533
    %v537 = vxor.u32 %v536, 2147483648
    %v538 = vmul.f32 %v537, 1.442695
    %v539 = vpow.pop %v538
    %v540 = vadd.f32 %v539, 1.0
    %v541 = vrcp.pop %v540
    %v542 = vmul.f32 1.0, %v541
    %544 = vrot.lane.b32.xlu0 %v533, 64
    %v545 = vpop.permute.xlu0 %544
    %v547 = vmul.f32 %v542, %v545
    %549 = vrot.lane.b32.xlu0 %v547, 64
    %v550 = vpop.permute.xlu0 %549
    %v552 = vadd.f32 %v463, %v550
    %v553 = vtanh.pop %v552
    %v554 = vsub.f32 1.0, %v542
    %556 = vrot.lane.b32.xlu0 %v553, 96
    %v557 = vpop.permute.xlu0 %556
    %v559 = vmul.f32 %v554, %v557
    %v560 = vmul.f32 %v542, %v455
    %v561 = vadd.f32 %v559, %v560
    %563 = vrot.lane.b32.xlu0 %v561, 96
    %v564 = vpop.permute.xlu0 %563
    %s566 = scalar_lea.vmem %s3, 32
    %567 = vst.msk [vmem:[%s566] sm:$0xff] %vm36, %v564
    %s568 = scalar_lea.vmem %s0, 40
    %v569 = vld [vmem:[%s568] sm:$0xff]
    %v570 = vsel %vm36, %v564, 0
    %572 = vmatprep.subr.mxu0 0.0
    %573 = vmatpush1.msra.mxu0 %v23
    %574 = vmatprep.subr.mxu0 0.0
    %575 = vmatpush1.msra.mxu0 %v24
    %576 = vmatprep.subr.mxu0 0.0
    %577 = vmatpush1.msra.mxu0 %v25
    %578 = vmatprep.subr.mxu0 0.0
    %579 = vmatpush1.msra.mxu0 %v26
    %580 = vmatprep.subr.mxu0 0.0
    %581 = vmatpush1.msra.mxu0 0.0
    %582 = vmatprep.subr.mxu0 0.0
    %583 = vmatpush1.msra.mxu0 0.0
    %584 = vmatprep.subr.mxu0 0.0
    %585 = vmatpush1.msra.mxu0 0.0
    %586 = vmatprep.subr.mxu0 0.0
    %587 = vmatpush1.msra.mxu0 0.0
    %588 = vmatprep.subr.mxu0 0.0
    %589 = vmatpush1.msra.mxu0 0.0
    %590 = vmatprep.subr.mxu0 0.0
    %591 = vmatpush1.msra.mxu0 0.0
    %592 = vmatprep.subr.mxu0 0.0
    %593 = vmatpush1.msra.mxu0 0.0
    %594 = vmatprep.subr.mxu0 0.0
    %595 = vmatpush1.msra.mxu0 0.0
    %596 = vmatprep.subr.mxu0 0.0
    %597 = vmatpush1.msra.mxu0 0.0
    %598 = vmatprep.subr.mxu0 0.0
    %599 = vmatpush1.msra.mxu0 0.0
    %600 = vmatprep.subr.mxu0 0.0
    %601 = vmatpush1.msra.mxu0 0.0
    %602 = vmatprep.subr.mxu0 0.0
    %603 = vmatpush1.msra.mxu0 0.0
    %604 = vmatprep.subr.mxu0 0.0
    %605 = vmatpush1.msra.mxu0 0.0
    %606 = vmatprep.subr.mxu0 0.0
    %607 = vmatpush1.msra.mxu0 0.0
    %608 = vmatprep.subr.mxu0 0.0
    %609 = vmatpush1.msra.mxu0 0.0
    %610 = vmatprep.subr.mxu0 0.0
    %611 = vmatpush1.msra.mxu0 0.0
    %612 = vmatprep.subr.mxu0 0.0
    %613 = vmatpush1.msra.mxu0 0.0
    %614 = vmatprep.subr.mxu0 0.0
    %615 = vmatpush1.msra.mxu0 0.0
    %616 = vmatprep.subr.mxu0 0.0
    %617 = vmatpush1.msra.mxu0 0.0
    %618 = vmatprep.subr.mxu0 0.0
    %619 = vmatpush1.msra.mxu0 0.0
    %620 = vmatprep.subr.mxu0 0.0
    %621 = vmatpush1.msra.mxu0 0.0
    %622 = vmatprep.subr.mxu0 0.0
    %623 = vmatpush1.msra.mxu0 0.0
    %624 = vmatprep.subr.mxu0 0.0
    %625 = vmatpush1.msra.mxu0 0.0
    %626 = vmatprep.subr.mxu0 0.0
    %627 = vmatpush1.msra.mxu0 0.0
    %628 = vmatprep.subr.mxu0 0.0
    %629 = vmatpush1.msra.mxu0 0.0
    %630 = vmatprep.subr.mxu0 0.0
    %631 = vmatpush1.msra.mxu0 0.0
    %632 = vmatprep.subr.mxu0 0.0
    %633 = vmatpush1.msra.mxu0 0.0
    %634 = vmatprep.subr.mxu0 0.0
    %635 = vmatpush1.msra.mxu0 0.0
    %636 = vmatprep.mubr.f32.mxu0 0.0
    %637 = vmatmul.mubr.f32.gmra.mrb[0].mxu0 %v570
    %v638 = vpop.f32.mrb[0].mxu0
    %v639 = vadd.f32 %v34, %v638
    %v640 = vpop.f32.mrb[0].mxu0
    %641 = vdwg.mxu0
    %v642 = vadd.f32 %v569, %v639
    %v643 = vxor.u32 %v642, 2147483648
    %v644 = vmul.f32 %v643, 1.442695
    %v645 = vpow.pop %v644
    %v646 = vadd.f32 %v645, 1.0
    %v647 = vrcp.pop %v646
    %v648 = vmul.f32 1.0, %v647
    %650 = vrot.lane.b32.xlu0 %v639, 64
    %v651 = vpop.permute.xlu0 %650
    %v653 = vmul.f32 %v648, %v651
    %655 = vrot.lane.b32.xlu0 %v653, 64
    %v656 = vpop.permute.xlu0 %655
    %v658 = vadd.f32 %v569, %v656
    %v659 = vtanh.pop %v658
    %v660 = vsub.f32 1.0, %v648
    %662 = vrot.lane.b32.xlu0 %v659, 96
    %v663 = vpop.permute.xlu0 %662
    %v665 = vmul.f32 %v660, %v663
    %v666 = vmul.f32 %v648, %v561
    %v667 = vadd.f32 %v665, %v666
    %669 = vrot.lane.b32.xlu0 %v667, 96
    %v670 = vpop.permute.xlu0 %669
    %s672 = scalar_lea.vmem %s3, 40
    %673 = vst.msk [vmem:[%s672] sm:$0xff] %vm36, %v670
    %s674 = scalar_lea.vmem %s0, 48
    %v675 = vld [vmem:[%s674] sm:$0xff]
    %v676 = vsel %vm36, %v670, 0
    %678 = vmatprep.subr.mxu0 0.0
    %679 = vmatpush1.msra.mxu0 %v23
    %680 = vmatprep.subr.mxu0 0.0
    %681 = vmatpush1.msra.mxu0 %v24
    %682 = vmatprep.subr.mxu0 0.0
    %683 = vmatpush1.msra.mxu0 %v25
    %684 = vmatprep.subr.mxu0 0.0
    %685 = vmatpush1.msra.mxu0 %v26
    %686 = vmatprep.subr.mxu0 0.0
    %687 = vmatpush1.msra.mxu0 0.0
    %688 = vmatprep.subr.mxu0 0.0
    %689 = vmatpush1.msra.mxu0 0.0
    %690 = vmatprep.subr.mxu0 0.0
    %691 = vmatpush1.msra.mxu0 0.0
    %692 = vmatprep.subr.mxu0 0.0
    %693 = vmatpush1.msra.mxu0 0.0
    %694 = vmatprep.subr.mxu0 0.0
    %695 = vmatpush1.msra.mxu0 0.0
    %696 = vmatprep.subr.mxu0 0.0
    %697 = vmatpush1.msra.mxu0 0.0
    %698 = vmatprep.subr.mxu0 0.0
    %699 = vmatpush1.msra.mxu0 0.0
    %700 = vmatprep.subr.mxu0 0.0
    %701 = vmatpush1.msra.mxu0 0.0
    %702 = vmatprep.subr.mxu0 0.0
    %703 = vmatpush1.msra.mxu0 0.0
    %704 = vmatprep.subr.mxu0 0.0
    %705 = vmatpush1.msra.mxu0 0.0
    %706 = vmatprep.subr.mxu0 0.0
    %707 = vmatpush1.msra.mxu0 0.0
    %708 = vmatprep.subr.mxu0 0.0
    %709 = vmatpush1.msra.mxu0 0.0
    %710 = vmatprep.subr.mxu0 0.0
    %711 = vmatpush1.msra.mxu0 0.0
    %712 = vmatprep.subr.mxu0 0.0
    %713 = vmatpush1.msra.mxu0 0.0
    %714 = vmatprep.subr.mxu0 0.0
    %715 = vmatpush1.msra.mxu0 0.0
    %716 = vmatprep.subr.mxu0 0.0
    %717 = vmatpush1.msra.mxu0 0.0
    %718 = vmatprep.subr.mxu0 0.0
    %719 = vmatpush1.msra.mxu0 0.0
    %720 = vmatprep.subr.mxu0 0.0
    %721 = vmatpush1.msra.mxu0 0.0
    %722 = vmatprep.subr.mxu0 0.0
    %723 = vmatpush1.msra.mxu0 0.0
    %724 = vmatprep.subr.mxu0 0.0
    %725 = vmatpush1.msra.mxu0 0.0
    %726 = vmatprep.subr.mxu0 0.0
    %727 = vmatpush1.msra.mxu0 0.0
    %728 = vmatprep.subr.mxu0 0.0
    %729 = vmatpush1.msra.mxu0 0.0
    %730 = vmatprep.subr.mxu0 0.0
    %731 = vmatpush1.msra.mxu0 0.0
    %732 = vmatprep.subr.mxu0 0.0
    %733 = vmatpush1.msra.mxu0 0.0
    %734 = vmatprep.subr.mxu0 0.0
    %735 = vmatpush1.msra.mxu0 0.0
    %736 = vmatprep.subr.mxu0 0.0
    %737 = vmatpush1.msra.mxu0 0.0
    %738 = vmatprep.subr.mxu0 0.0
    %739 = vmatpush1.msra.mxu0 0.0
    %740 = vmatprep.subr.mxu0 0.0
    %741 = vmatpush1.msra.mxu0 0.0
    %742 = vmatprep.mubr.f32.mxu0 0.0
    %743 = vmatmul.mubr.f32.gmra.mrb[0].mxu0 %v676
    %v744 = vpop.f32.mrb[0].mxu0
    %v745 = vadd.f32 %v34, %v744
    %v746 = vpop.f32.mrb[0].mxu0
    %747 = vdwg.mxu0
    %v748 = vadd.f32 %v675, %v745
    %v749 = vxor.u32 %v748, 2147483648
    %v750 = vmul.f32 %v749, 1.442695
    %v751 = vpow.pop %v750
    %v752 = vadd.f32 %v751, 1.0
    %v753 = vrcp.pop %v752
    %v754 = vmul.f32 1.0, %v753
    %756 = vrot.lane.b32.xlu0 %v745, 64
    %v757 = vpop.permute.xlu0 %756
    %v759 = vmul.f32 %v754, %v757
    %761 = vrot.lane.b32.xlu0 %v759, 64
    %v762 = vpop.permute.xlu0 %761
    %v764 = vadd.f32 %v675, %v762
    %v765 = vtanh.pop %v764
    %v766 = vsub.f32 1.0, %v754
    %768 = vrot.lane.b32.xlu0 %v765, 96
    %v769 = vpop.permute.xlu0 %768
    %v771 = vmul.f32 %v766, %v769
    %v772 = vmul.f32 %v754, %v667
    %v773 = vadd.f32 %v771, %v772
    %775 = vrot.lane.b32.xlu0 %v773, 96
    %v776 = vpop.permute.xlu0 %775
    %s778 = scalar_lea.vmem %s3, 48
    %779 = vst.msk [vmem:[%s778] sm:$0xff] %vm36, %v776
    %s780 = scalar_lea.vmem %s0, 56
    %v781 = vld [vmem:[%s780] sm:$0xff]
    %v782 = vsel %vm36, %v776, 0
    %784 = vmatprep.subr.mxu0 0.0
    %785 = vmatpush1.msra.mxu0 %v23
    %786 = vmatprep.subr.mxu0 0.0
    %787 = vmatpush1.msra.mxu0 %v24
    %788 = vmatprep.subr.mxu0 0.0
    %789 = vmatpush1.msra.mxu0 %v25
    %790 = vmatprep.subr.mxu0 0.0
    %791 = vmatpush1.msra.mxu0 %v26
    %792 = vmatprep.subr.mxu0 0.0
    %793 = vmatpush1.msra.mxu0 0.0
    %794 = vmatprep.subr.mxu0 0.0
    %795 = vmatpush1.msra.mxu0 0.0
    %796 = vmatprep.subr.mxu0 0.0
    %797 = vmatpush1.msra.mxu0 0.0
    %798 = vmatprep.subr.mxu0 0.0
    %799 = vmatpush1.msra.mxu0 0.0
    %800 = vmatprep.subr.mxu0 0.0
    %801 = vmatpush1.msra.mxu0 0.0
    %802 = vmatprep.subr.mxu0 0.0
    %803 = vmatpush1.msra.mxu0 0.0
    %804 = vmatprep.subr.mxu0 0.0
    %805 = vmatpush1.msra.mxu0 0.0
    %806 = vmatprep.subr.mxu0 0.0
    %807 = vmatpush1.msra.mxu0 0.0
    %808 = vmatprep.subr.mxu0 0.0
    %809 = vmatpush1.msra.mxu0 0.0
    %810 = vmatprep.subr.mxu0 0.0
    %811 = vmatpush1.msra.mxu0 0.0
    %812 = vmatprep.subr.mxu0 0.0
    %813 = vmatpush1.msra.mxu0 0.0
    %814 = vmatprep.subr.mxu0 0.0
    %815 = vmatpush1.msra.mxu0 0.0
    %816 = vmatprep.subr.mxu0 0.0
    %817 = vmatpush1.msra.mxu0 0.0
    %818 = vmatprep.subr.mxu0 0.0
    %819 = vmatpush1.msra.mxu0 0.0
    %820 = vmatprep.subr.mxu0 0.0
    %821 = vmatpush1.msra.mxu0 0.0
    %822 = vmatprep.subr.mxu0 0.0
    %823 = vmatpush1.msra.mxu0 0.0
    %824 = vmatprep.subr.mxu0 0.0
    %825 = vmatpush1.msra.mxu0 0.0
    %826 = vmatprep.subr.mxu0 0.0
    %827 = vmatpush1.msra.mxu0 0.0
    %828 = vmatprep.subr.mxu0 0.0
    %829 = vmatpush1.msra.mxu0 0.0
    %830 = vmatprep.subr.mxu0 0.0
    %831 = vmatpush1.msra.mxu0 0.0
    %832 = vmatprep.subr.mxu0 0.0
    %833 = vmatpush1.msra.mxu0 0.0
    %834 = vmatprep.subr.mxu0 0.0
    %835 = vmatpush1.msra.mxu0 0.0
    %836 = vmatprep.subr.mxu0 0.0
    %837 = vmatpush1.msra.mxu0 0.0
    %838 = vmatprep.subr.mxu0 0.0
    %839 = vmatpush1.msra.mxu0 0.0
    %840 = vmatprep.subr.mxu0 0.0
    %841 = vmatpush1.msra.mxu0 0.0
    %842 = vmatprep.subr.mxu0 0.0
    %843 = vmatpush1.msra.mxu0 0.0
    %844 = vmatprep.subr.mxu0 0.0
    %845 = vmatpush1.msra.mxu0 0.0
    %846 = vmatprep.subr.mxu0 0.0
    %847 = vmatpush1.msra.mxu0 0.0
    %848 = vmatprep.mubr.f32.mxu0 0.0
    %849 = vmatmul.mubr.f32.gmra.mrb[0].mxu0 %v782
    %v850 = vpop.f32.mrb[0].mxu0
    %v851 = vadd.f32 %v34, %v850
    %v852 = vpop.f32.mrb[0].mxu0
    %853 = vdwg.mxu0
    %v854 = vadd.f32 %v781, %v851
    %v855 = vxor.u32 %v854, 2147483648
    %v856 = vmul.f32 %v855, 1.442695
    %v857 = vpow.pop %v856
    %v858 = vadd.f32 %v857, 1.0
    %v859 = vrcp.pop %v858
    %v860 = vmul.f32 1.0, %v859
    %862 = vrot.lane.b32.xlu0 %v851, 64
    %v863 = vpop.permute.xlu0 %862
    %v865 = vmul.f32 %v860, %v863
    %867 = vrot.lane.b32.xlu0 %v865, 64
    %v868 = vpop.permute.xlu0 %867
    %v870 = vadd.f32 %v781, %v868
    %v871 = vtanh.pop %v870
    %v872 = vsub.f32 1.0, %v860
    %874 = vrot.lane.b32.xlu0 %v871, 96
    %v875 = vpop.permute.xlu0 %874
    %v877 = vmul.f32 %v872, %v875
    %v878 = vmul.f32 %v860, %v773
    %v879 = vadd.f32 %v877, %v878
    %881 = vrot.lane.b32.xlu0 %v879, 96
    %v882 = vpop.permute.xlu0 %881
    %s884 = scalar_lea.vmem %s3, 56
    %885 = vst.msk [vmem:[%s884] sm:$0xff] %vm36, %v882
    %886 = vst.msk [vmem:[#allocation2] sm:$0xff] %vm36, %v882
    // Predicated region
    $region18: #{linear_rnn_base_forward.2} parent=1 // pred_check
      %p887 = pneg %p17
    $region19: #{linear_rnn_base_forward.2} parent=1 // pred_check_branch
      %889 = sbr.rel (%p887) target = $region21
    $region20: #{linear_rnn_base_forward.2} parent=1 // pred_region
      %890 = vst.msk [vmem:[#allocation3] sm:$0xff] %vm36, %v882
    $region21: #{linear_rnn_base_forward.2} parent=1 // pred_fallthru
      _
    // Predicated region
    $region22: #{linear_rnn_base_forward.2} parent=1 // pred_check
      _
    $region23: #{linear_rnn_base_forward.2} parent=1 // pred_check_branch
      %892 = sbr.rel (0) target = $region25
    $region24: #{linear_rnn_base_forward.2} parent=1 // pred_region
      _
    $region25: #{linear_rnn_base_forward.2} parent=1 // pred_fallthru
      _
    // Predicated region
    $region26: #{linear_rnn_base_forward.2} parent=1 // pred_check
      _
    $region27: #{linear_rnn_base_forward.2} parent=1 // pred_check_branch
      %894 = sbr.rel (0) target = $region29
    $region28: #{linear_rnn_base_forward.2} parent=1 // pred_region
      %s896 = ssub.s32 128, 128
      %897 = vsyncadd [#allocation4], %s896
      %s899 = sshll.u32 [#allocation3], 4
      %s900 = int_to_ptr.vmem [resolvable:$true] %s899
      %902 = dma.vmem_to_hbm [thread:$0]  %s900, 128, %s4, [#allocation4]
    $region29: #{linear_rnn_base_forward.2} parent=1 // pred_fallthru
      _
    // Predicated region
    $region30: #{linear_rnn_base_forward.2} parent=1 // pred_check
      _
    $region31: #{linear_rnn_base_forward.2} parent=1 // pred_check_branch
      %904 = sbr.rel (0) target = $region33
    $region32: #{linear_rnn_base_forward.2} parent=1 // pred_region
      _
    $region33: #{linear_rnn_base_forward.2} parent=1 // pred_fallthru
      _
    // Predicated region
    $region34: #{linear_rnn_base_forward.2} parent=1 // pred_check
      _
    $region35: #{linear_rnn_base_forward.2} parent=1 // pred_check_branch
      %906 = sbr.rel (0) target = $region37
    $region36: #{linear_rnn_base_forward.2} parent=1 // pred_region
      %907 = dma.done [#allocation4], 128
    $region37: #{linear_rnn_base_forward.2} parent=1 // pred_fallthru
      _
    %908 = vsyncpa [#allocation4], 1

// kernel: linear_rnn_base_forward.3
$region0: #{linear_rnn_base_forward.3}
  #allocation0 [shape = 'u32[]', space=smem, size = 0x4, offset = 0x4, fixed_abs, tag = 'smem constant byte address 0x4 - core index']
  #allocation1 [shape = 'u32[144,128]{1,0:T(1,128)}', space=vmem, size = 0x12000, scoped, tag = 'internal scratch']
  #allocation2 [shape = 'f32[8,32]{1,0:T(8,128)}', space=vmem, size = 0x1000, scoped, tag = 'scratch operand']
  %s0 = inlined_call_operand.vmem [shape: f32[8,8,96], index: 0, kind: input, shape index: {}]
  %s1 = inlined_call_operand.vmem [shape: f32[32,96], index: 1, kind: input, shape index: {}]
  %s2 = inlined_call_operand.vmem [shape: f32[1,96], index: 2, kind: input, shape index: {}]
  %s3 = inlined_call_operand.vmem [shape: f32[8,8,32], index: 3, kind: output, shape index: {0}]
  %s4 = inlined_call_operand.vmem [shape: f32[8,32], index: 4, kind: output, shape index: {1}]
  %5 = xla_tuple %s3, %s4
  %s6 = sld [smem:[#allocation0]]
  $region38: #{linear_rnn_base_forward.3} parent=0
    _
  %s8 = ssub.s32 1, %s6
  %s9 = scalar_select 0, %s8, %s6
  // Predicated region
  $region2: #{linear_rnn_base_forward.3} parent=0 // pred_check
    _
  $region3: #{linear_rnn_base_forward.3} parent=0 // pred_check_branch
    %11 = sbr.rel (0) target = $region5
  $region4: #{linear_rnn_base_forward.3} parent=0 // pred_region
    _
  $region5: #{linear_rnn_base_forward.3} parent=0 // pred_fallthru
    _
  // Predicated region
  $region6: #{linear_rnn_base_forward.3} parent=0 // pred_check
    _
  $region7: #{linear_rnn_base_forward.3} parent=0 // pred_check_branch
    %13 = sbr.rel (0) target = $region9
  $region8: #{linear_rnn_base_forward.3} parent=0 // pred_region
    _
  $region9: #{linear_rnn_base_forward.3} parent=0 // pred_fallthru
    _
  // Predicated region
  $region10: #{linear_rnn_base_forward.3} parent=0 // pred_check
    _
  $region11: #{linear_rnn_base_forward.3} parent=0 // pred_check_branch
    %15 = sbr.rel (0) target = $region13
  $region12: #{linear_rnn_base_forward.3} parent=0 // pred_region
    _
  $region13: #{linear_rnn_base_forward.3} parent=0 // pred_fallthru
    _
  %p16 = scmp.eq.s32.totalorder 0, 0
  // Predicated region
  $region14: #{linear_rnn_base_forward.3} parent=0 // pred_check
    %p17 = pneg %p16
  $region15: #{linear_rnn_base_forward.3} parent=0 // pred_check_branch
    %19 = sbr.rel (%p17) target = $region17
  $region16: #{linear_rnn_base_forward.3} parent=0 // pred_region
    %vm20 = vcmask 261120
    %21 = vst.msk [vmem:[#allocation2] sm:$0xff] %vm20, 0.0
  $region17: #{linear_rnn_base_forward.3} parent=0 // pred_fallthru
    _
  %v22 = vld [vmem:[%s1] sm:$0xff]
  %v23 = vld [vmem:[%s1 + $0x8] sm:$0xff]
  %v24 = vld [vmem:[%s1 + $0x10] sm:$0xff]
  %v25 = vld [vmem:[%s1 + $0x18] sm:$0xff]
  %v26 = vld [vmem:[%s2] sm:$0x1]
  %v27 = vld [vmem:[#allocation2] sm:$0xff]
  %v28 = vld [vmem:[%s0] sm:$0xff]
  %v30 = vlaneseq
  %v31 = vshrl.u32 %v30, 7
  %v32 = vsub.s32 0, %v31
  %v33 = vrot.slane %v26, %v32
  %vm35 = vcmask 261120
  %v37 = vsel %vm35, %v27, 0
  %39 = vmatprep.subr.mxu0 0.0
  %40 = vmatpush1.msra.mxu0 %v22
  %41 = vmatprep.subr.mxu0 0.0
  %42 = vmatpush1.msra.mxu0 %v23
  %43 = vmatprep.subr.mxu0 0.0
  %44 = vmatpush1.msra.mxu0 %v24
  %45 = vmatprep.subr.mxu0 0.0
  %46 = vmatpush1.msra.mxu0 %v25
  %47 = vmatprep.subr.mxu0 0.0
  %48 = vmatpush1.msra.mxu0 0.0
  %49 = vmatprep.subr.mxu0 0.0
  %50 = vmatpush1.msra.mxu0 0.0
  %51 = vmatprep.subr.mxu0 0.0
  %52 = vmatpush1.msra.mxu0 0.0
  %53 = vmatprep.subr.mxu0 0.0
  %54 = vmatpush1.msra.mxu0 0.0
  %55 = vmatprep.subr.mxu0 0.0
  %56 = vmatpush1.msra.mxu0 0.0
  %57 = vmatprep.subr.mxu0 0.0
  %58 = vmatpush1.msra.mxu0 0.0
  %59 = vmatprep.subr.mxu0 0.0
  %60 = vmatpush1.msra.mxu0 0.0
  %61 = vmatprep.subr.mxu0 0.0
  %62 = vmatpush1.msra.mxu0 0.0
  %63 = vmatprep.subr.mxu0 0.0
  %64 = vmatpush1.msra.mxu0 0.0
  %65 = vmatprep.subr.mxu0 0.0
  %66 = vmatpush1.msra.mxu0 0.0
  %67 = vmatprep.subr.mxu0 0.0
  %68 = vmatpush1.msra.mxu0 0.0
  %69 = vmatprep.subr.mxu0 0.0
  %70 = vmatpush1.msra.mxu0 0.0
  %71 = vmatprep.subr.mxu0 0.0
  %72 = vmatpush1.msra.mxu0 0.0
  %73 = vmatprep.subr.mxu0 0.0
  %74 = vmatpush1.msra.mxu0 0.0
  %75 = vmatprep.subr.mxu0 0.0
  %76 = vmatpush1.msra.mxu0 0.0
  %77 = vmatprep.subr.mxu0 0.0
  %78 = vmatpush1.msra.mxu0 0.0
  %79 = vmatprep.subr.mxu0 0.0
  %80 = vmatpush1.msra.mxu0 0.0
  %81 = vmatprep.subr.mxu0 0.0
  %82 = vmatpush1.msra.mxu0 0.0
  %83 = vmatprep.subr.mxu0 0.0
  %84 = vmatpush1.msra.mxu0 0.0
  %85 = vmatprep.subr.mxu0 0.0
  %86 = vmatpush1.msra.mxu0 0.0
  %87 = vmatprep.subr.mxu0 0.0
  %88 = vmatpush1.msra.mxu0 0.0
  %89 = vmatprep.subr.mxu0 0.0
  %90 = vmatpush1.msra.mxu0 0.0
  %91 = vmatprep.subr.mxu0 0.0
  %92 = vmatpush1.msra.mxu0 0.0
  %93 = vmatprep.subr.mxu0 0.0
  %94 = vmatpush1.msra.mxu0 0.0
  %95 = vmatprep.subr.mxu0 0.0
  %96 = vmatpush1.msra.mxu0 0.0
  %97 = vmatprep.subr.mxu0 0.0
  %98 = vmatpush1.msra.mxu0 0.0
  %99 = vmatprep.subr.mxu0 0.0
  %100 = vmatpush1.msra.mxu0 0.0
  %101 = vmatprep.subr.mxu0 0.0
  %102 = vmatpush1.msra.mxu0 0.0
  %103 = vmatprep.mubr.f32.mxu0 0.0
  %104 = vmatmul.mubr.f32.gmra.mrb[0].mxu0 %v37
  %v105 = vpop.f32.mrb[0].mxu0
  %v106 = vadd.f32 %v33, %v105
  %v107 = vpop.f32.mrb[0].mxu0
  %108 = vdwg.mxu0
  %v109 = vadd.f32 %v28, %v106
  %v110 = vxor.u32 %v109, 2147483648
  %v111 = vmul.f32 %v110, 1.442695
  %v112 = vpow.pop %v111
  %v113 = vadd.f32 %v112, 1.0
  %v114 = vrcp.pop %v113
  %v115 = vmul.f32 1.0, %v114
  %117 = vrot.lane.b32.xlu0 %v106, 64
  %v118 = vpop.permute.xlu0 %117
  %v120 = vmul.f32 %v115, %v118
  %122 = vrot.lane.b32.xlu0 %v120, 64
  %v123 = vpop.permute.xlu0 %122
  %v125 = vadd.f32 %v28, %v123
  %v126 = vtanh.pop %v125
  %v127 = vsub.f32 1.0, %v115
  %129 = vrot.lane.b32.xlu0 %v126, 96
  %v130 = vpop.permute.xlu0 %129
  %v132 = vmul.f32 %v127, %v130
  %133 = vrot.lane.b32.xlu0 %v27, 32
  %v134 = vpop.permute.xlu0 %133
  %v136 = vmul.f32 %v115, %v134
  %v137 = vadd.f32 %v132, %v136
  %139 = vrot.lane.b32.xlu0 %v137, 96
  %v140 = vpop.permute.xlu0 %139
  %142 = vst.msk [vmem:[%s3] sm:$0xff] %vm35, %v140
  %s143 = scalar_lea.vmem %s0, 8
  %v144 = vld [vmem:[%s143] sm:$0xff]
  %v145 = vsel %vm35, %v140, 0
  %147 = vmatprep.subr.mxu0 0.0
  %148 = vmatpush1.msra.mxu0 %v22
  %149 = vmatprep.subr.mxu0 0.0
  %150 = vmatpush1.msra.mxu0 %v23
  %151 = vmatprep.subr.mxu0 0.0
  %152 = vmatpush1.msra.mxu0 %v24
  %153 = vmatprep.subr.mxu0 0.0
  %154 = vmatpush1.msra.mxu0 %v25
  %155 = vmatprep.subr.mxu0 0.0
  %156 = vmatpush1.msra.mxu0 0.0
  %157 = vmatprep.subr.mxu0 0.0
  %158 = vmatpush1.msra.mxu0 0.0
  %159 = vmatprep.subr.mxu0 0.0
  %160 = vmatpush1.msra.mxu0 0.0
  %161 = vmatprep.subr.mxu0 0.0
  %162 = vmatpush1.msra.mxu0 0.0
  %163 = vmatprep.subr.mxu0 0.0
  %164 = vmatpush1.msra.mxu0 0.0
  %165 = vmatprep.subr.mxu0 0.0
  %166 = vmatpush1.msra.mxu0 0.0
  %167 = vmatprep.subr.mxu0 0.0
  %168 = vmatpush1.msra.mxu0 0.0
  %169 = vmatprep.subr.mxu0 0.0
  %170 = vmatpush1.msra.mxu0 0.0
  %171 = vmatprep.subr.mxu0 0.0
  %172 = vmatpush1.msra.mxu0 0.0
  %173 = vmatprep.subr.mxu0 0.0
  %174 = vmatpush1.msra.mxu0 0.0
  %175 = vmatprep.subr.mxu0 0.0
  %176 = vmatpush1.msra.mxu0 0.0
  %177 = vmatprep.subr.mxu0 0.0
  %178 = vmatpush1.msra.mxu0 0.0
  %179 = vmatprep.subr.mxu0 0.0
  %180 = vmatpush1.msra.mxu0 0.0
  %181 = vmatprep.subr.mxu0 0.0
  %182 = vmatpush1.msra.mxu0 0.0
  %183 = vmatprep.subr.mxu0 0.0
  %184 = vmatpush1.msra.mxu0 0.0
  %185 = vmatprep.subr.mxu0 0.0
  %186 = vmatpush1.msra.mxu0 0.0
  %187 = vmatprep.subr.mxu0 0.0
  %188 = vmatpush1.msra.mxu0 0.0
  %189 = vmatprep.subr.mxu0 0.0
  %190 = vmatpush1.msra.mxu0 0.0
  %191 = vmatprep.subr.mxu0 0.0
  %192 = vmatpush1.msra.mxu0 0.0
  %193 = vmatprep.subr.mxu0 0.0
  %194 = vmatpush1.msra.mxu0 0.0
  %195 = vmatprep.subr.mxu0 0.0
  %196 = vmatpush1.msra.mxu0 0.0
  %197 = vmatprep.subr.mxu0 0.0
  %198 = vmatpush1.msra.mxu0 0.0
  %199 = vmatprep.subr.mxu0 0.0
  %200 = vmatpush1.msra.mxu0 0.0
  %201 = vmatprep.subr.mxu0 0.0
  %202 = vmatpush1.msra.mxu0 0.0
  %203 = vmatprep.subr.mxu0 0.0
  %204 = vmatpush1.msra.mxu0 0.0
  %205 = vmatprep.subr.mxu0 0.0
  %206 = vmatpush1.msra.mxu0 0.0
  %207 = vmatprep.subr.mxu0 0.0
  %208 = vmatpush1.msra.mxu0 0.0
  %209 = vmatprep.subr.mxu0 0.0
  %210 = vmatpush1.msra.mxu0 0.0
  %211 = vmatprep.mubr.f32.mxu0 0.0
  %212 = vmatmul.mubr.f32.gmra.mrb[0].mxu0 %v145
  %v213 = vpop.f32.mrb[0].mxu0
  %v214 = vadd.f32 %v33, %v213
  %v215 = vpop.f32.mrb[0].mxu0
  %216 = vdwg.mxu0
  %v217 = vadd.f32 %v144, %v214
  %v218 = vxor.u32 %v217, 2147483648
  %v219 = vmul.f32 %v218, 1.442695
  %v220 = vpow.pop %v219
  %v221 = vadd.f32 %v220, 1.0
  %v222 = vrcp.pop %v221
  %v223 = vmul.f32 1.0, %v222
  %225 = vrot.lane.b32.xlu0 %v214, 64
  %v226 = vpop.permute.xlu0 %225
  %v228 = vmul.f32 %v223, %v226
  %230 = vrot.lane.b32.xlu0 %v228, 64
  %v231 = vpop.permute.xlu0 %230
  %v233 = vadd.f32 %v144, %v231
  %v234 = vtanh.pop %v233
  %v235 = vsub.f32 1.0, %v223
  %237 = vrot.lane.b32.xlu0 %v234, 96
  %v238 = vpop.permute.xlu0 %237
  %v240 = vmul.f32 %v235, %v238
  %v241 = vmul.f32 %v223, %v137
  %v242 = vadd.f32 %v240, %v241
  %244 = vrot.lane.b32.xlu0 %v242, 96
  %v245 = vpop.permute.xlu0 %244
  %s247 = scalar_lea.vmem %s3, 8
  %248 = vst.msk [vmem:[%s247] sm:$0xff] %vm35, %v245
  %s249 = scalar_lea.vmem %s0, 16
  %v250 = vld [vmem:[%s249] sm:$0xff]
  %v251 = vsel %vm35, %v245, 0
  %253 = vmatprep.subr.mxu0 0.0
  %254 = vmatpush1.msra.mxu0 %v22
  %255 = vmatprep.subr.mxu0 0.0
  %256 = vmatpush1.msra.mxu0 %v23
  %257 = vmatprep.subr.mxu0 0.0
  %258 = vmatpush1.msra.mxu0 %v24
  %259 = vmatprep.subr.mxu0 0.0
  %260 = vmatpush1.msra.mxu0 %v25
  %261 = vmatprep.subr.mxu0 0.0
  %262 = vmatpush1.msra.mxu0 0.0
  %263 = vmatprep.subr.mxu0 0.0
  %264 = vmatpush1.msra.mxu0 0.0
  %265 = vmatprep.subr.mxu0 0.0
  %266 = vmatpush1.msra.mxu0 0.0
  %267 = vmatprep.subr.mxu0 0.0
  %268 = vmatpush1.msra.mxu0 0.0
  %269 = vmatprep.subr.mxu0 0.0
  %270 = vmatpush1.msra.mxu0 0.0
  %271 = vmatprep.subr.mxu0 0.0
  %272 = vmatpush1.msra.mxu0 0.0
  %273 = vmatprep.subr.mxu0 0.0
  %274 = vmatpush1.msra.mxu0 0.0
  %275 = vmatprep.subr.mxu0 0.0
  %276 = vmatpush1.msra.mxu0 0.0
  %277 = vmatprep.subr.mxu0 0.0
  %278 = vmatpush1.msra.mxu0 0.0
  %279 = vmatprep.subr.mxu0 0.0
  %280 = vmatpush1.msra.mxu0 0.0
  %281 = vmatprep.subr.mxu0 0.0
  %282 = vmatpush1.msra.mxu0 0.0
  %283 = vmatprep.subr.mxu0 0.0
  %284 = vmatpush1.msra.mxu0 0.0
  %285 = vmatprep.subr.mxu0 0.0
  %286 = vmatpush1.msra.mxu0 0.0
  %287 = vmatprep.subr.mxu0 0.0
  %288 = vmatpush1.msra.mxu0 0.0
  %289 = vmatprep.subr.mxu0 0.0
  %290 = vmatpush1.msra.mxu0 0.0
  %291 = vmatprep.subr.mxu0 0.0
  %292 = vmatpush1.msra.mxu0 0.0
  %293 = vmatprep.subr.mxu0 0.0
  %294 = vmatpush1.msra.mxu0 0.0
  %295 = vmatprep.subr.mxu0 0.0
  %296 = vmatpush1.msra.mxu0 0.0
  %297 = vmatprep.subr.mxu0 0.0
  %298 = vmatpush1.msra.mxu0 0.0
  %299 = vmatprep.subr.mxu0 0.0
  %300 = vmatpush1.msra.mxu0 0.0
  %301 = vmatprep.subr.mxu0 0.0
  %302 = vmatpush1.msra.mxu0 0.0
  %303 = vmatprep.subr.mxu0 0.0
  %304 = vmatpush1.msra.mxu0 0.0
  %305 = vmatprep.subr.mxu0 0.0
  %306 = vmatpush1.msra.mxu0 0.0
  %307 = vmatprep.subr.mxu0 0.0
  %308 = vmatpush1.msra.mxu0 0.0
  %309 = vmatprep.subr.mxu0 0.0
  %310 = vmatpush1.msra.mxu0 0.0
  %311 = vmatprep.subr.mxu0 0.0
  %312 = vmatpush1.msra.mxu0 0.0
  %313 = vmatprep.subr.mxu0 0.0
  %314 = vmatpush1.msra.mxu0 0.0
  %315 = vmatprep.subr.mxu0 0.0
  %316 = vmatpush1.msra.mxu0 0.0
  %317 = vmatprep.mubr.f32.mxu0 0.0
  %318 = vmatmul.mubr.f32.gmra.mrb[0].mxu0 %v251
  %v319 = vpop.f32.mrb[0].mxu0
  %v320 = vadd.f32 %v33, %v319
  %v321 = vpop.f32.mrb[0].mxu0
  %322 = vdwg.mxu0
  %v323 = vadd.f32 %v250, %v320
  %v324 = vxor.u32 %v323, 2147483648
  %v325 = vmul.f32 %v324, 1.442695
  %v326 = vpow.pop %v325
  %v327 = vadd.f32 %v326, 1.0
  %v328 = vrcp.pop %v327
  %v329 = vmul.f32 1.0, %v328
  %331 = vrot.lane.b32.xlu0 %v320, 64
  %v332 = vpop.permute.xlu0 %331
  %v334 = vmul.f32 %v329, %v332
  %336 = vrot.lane.b32.xlu0 %v334, 64
  %v337 = vpop.permute.xlu0 %336
  %v339 = vadd.f32 %v250, %v337
  %v340 = vtanh.pop %v339
  %v341 = vsub.f32 1.0, %v329
  %343 = vrot.lane.b32.xlu0 %v340, 96
  %v344 = vpop.permute.xlu0 %343
  %v346 = vmul.f32 %v341, %v344
  %v347 = vmul.f32 %v329, %v242
  %v348 = vadd.f32 %v346, %v347
  %350 = vrot.lane.b32.xlu0 %v348, 96
  %v351 = vpop.permute.xlu0 %350
  %s353 = scalar_lea.vmem %s3, 16
  %354 = vst.msk [vmem:[%s353] sm:$0xff] %vm35, %v351
  %s355 = scalar_lea.vmem %s0, 24
  %v356 = vld [vmem:[%s355] sm:$0xff]
  %v357 = vsel %vm35, %v351, 0
  %359 = vmatprep.subr.mxu0 0.0
  %360 = vmatpush1.msra.mxu0 %v22
  %361 = vmatprep.subr.mxu0 0.0
  %362 = vmatpush1.msra.mxu0 %v23
  %363 = vmatprep.subr.mxu0 0.0
  %364 = vmatpush1.msra.mxu0 %v24
  %365 = vmatprep.subr.mxu0 0.0
  %366 = vmatpush1.msra.mxu0 %v25
  %367 = vmatprep.subr.mxu0 0.0
  %368 = vmatpush1.msra.mxu0 0.0
  %369 = vmatprep.subr.mxu0 0.0
  %370 = vmatpush1.msra.mxu0 0.0
  %371 = vmatprep.subr.mxu0 0.0
  %372 = vmatpush1.msra.mxu0 0.0
  %373 = vmatprep.subr.mxu0 0.0
  %374 = vmatpush1.msra.mxu0 0.0
  %375 = vmatprep.subr.mxu0 0.0
  %376 = vmatpush1.msra.mxu0 0.0
  %377 = vmatprep.subr.mxu0 0.0
  %378 = vmatpush1.msra.mxu0 0.0
  %379 = vmatprep.subr.mxu0 0.0
  %380 = vmatpush1.msra.mxu0 0.0
  %381 = vmatprep.subr.mxu0 0.0
  %382 = vmatpush1.msra.mxu0 0.0
  %383 = vmatprep.subr.mxu0 0.0
  %384 = vmatpush1.msra.mxu0 0.0
  %385 = vmatprep.subr.mxu0 0.0
  %386 = vmatpush1.msra.mxu0 0.0
  %387 = vmatprep.subr.mxu0 0.0
  %388 = vmatpush1.msra.mxu0 0.0
  %389 = vmatprep.subr.mxu0 0.0
  %390 = vmatpush1.msra.mxu0 0.0
  %391 = vmatprep.subr.mxu0 0.0
  %392 = vmatpush1.msra.mxu0 0.0
  %393 = vmatprep.subr.mxu0 0.0
  %394 = vmatpush1.msra.mxu0 0.0
  %395 = vmatprep.subr.mxu0 0.0
  %396 = vmatpush1.msra.mxu0 0.0
  %397 = vmatprep.subr.mxu0 0.0
  %398 = vmatpush1.msra.mxu0 0.0
  %399 = vmatprep.subr.mxu0 0.0
  %400 = vmatpush1.msra.mxu0 0.0
  %401 = vmatprep.subr.mxu0 0.0
  %402 = vmatpush1.msra.mxu0 0.0
  %403 = vmatprep.subr.mxu0 0.0
  %404 = vmatpush1.msra.mxu0 0.0
  %405 = vmatprep.subr.mxu0 0.0
  %406 = vmatpush1.msra.mxu0 0.0
  %407 = vmatprep.subr.mxu0 0.0
  %408 = vmatpush1.msra.mxu0 0.0
  %409 = vmatprep.subr.mxu0 0.0
  %410 = vmatpush1.msra.mxu0 0.0
  %411 = vmatprep.subr.mxu0 0.0
  %412 = vmatpush1.msra.mxu0 0.0
  %413 = vmatprep.subr.mxu0 0.0
  %414 = vmatpush1.msra.mxu0 0.0
  %415 = vmatprep.subr.mxu0 0.0
  %416 = vmatpush1.msra.mxu0 0.0
  %417 = vmatprep.subr.mxu0 0.0
  %418 = vmatpush1.msra.mxu0 0.0
  %419 = vmatprep.subr.mxu0 0.0
  %420 = vmatpush1.msra.mxu0 0.0
  %421 = vmatprep.subr.mxu0 0.0
  %422 = vmatpush1.msra.mxu0 0.0
  %423 = vmatprep.mubr.f32.mxu0 0.0
  %424 = vmatmul.mubr.f32.gmra.mrb[0].mxu0 %v357
  %v425 = vpop.f32.mrb[0].mxu0
  %v426 = vadd.f32 %v33, %v425
  %v427 = vpop.f32.mrb[0].mxu0
  %428 = vdwg.mxu0
  %v429 = vadd.f32 %v356, %v426
  %v430 = vxor.u32 %v429, 2147483648
  %v431 = vmul.f32 %v430, 1.442695
  %v432 = vpow.pop %v431
  %v433 = vadd.f32 %v432, 1.0
  %v434 = vrcp.pop %v433
  %v435 = vmul.f32 1.0, %v434
  %437 = vrot.lane.b32.xlu0 %v426, 64
  %v438 = vpop.permute.xlu0 %437
  %v440 = vmul.f32 %v435, %v438
  %442 = vrot.lane.b32.xlu0 %v440, 64
  %v443 = vpop.permute.xlu0 %442
  %v445 = vadd.f32 %v356, %v443
  %v446 = vtanh.pop %v445
  %v447 = vsub.f32 1.0, %v435
  %449 = vrot.lane.b32.xlu0 %v446, 96
  %v450 = vpop.permute.xlu0 %449
  %v452 = vmul.f32 %v447, %v450
  %v453 = vmul.f32 %v435, %v348
  %v454 = vadd.f32 %v452, %v453
  %456 = vrot.lane.b32.xlu0 %v454, 96
  %v457 = vpop.permute.xlu0 %456
  %s459 = scalar_lea.vmem %s3, 24
  %460 = vst.msk [vmem:[%s459] sm:$0xff] %vm35, %v457
  %s461 = scalar_lea.vmem %s0, 32
  %v462 = vld [vmem:[%s461] sm:$0xff]
  %v463 = vsel %vm35, %v457, 0
  %465 = vmatprep.subr.mxu0 0.0
  %466 = vmatpush1.msra.mxu0 %v22
  %467 = vmatprep.subr.mxu0 0.0
  %468 = vmatpush1.msra.mxu0 %v23
  %469 = vmatprep.subr.mxu0 0.0
  %470 = vmatpush1.msra.mxu0 %v24
  %471 = vmatprep.subr.mxu0 0.0
  %472 = vmatpush1.msra.mxu0 %v25
  %473 = vmatprep.subr.mxu0 0.0
  %474 = vmatpush1.msra.mxu0 0.0
  %475 = vmatprep.subr.mxu0 0.0
  %476 = vmatpush1.msra.mxu0 0.0
  %477 = vmatprep.subr.mxu0 0.0
  %478 = vmatpush1.msra.mxu0 0.0
  %479 = vmatprep.subr.mxu0 0.0
  %480 = vmatpush1.msra.mxu0 0.0
  %481 = vmatprep.subr.mxu0 0.0
  %482 = vmatpush1.msra.mxu0 0.0
  %483 = vmatprep.subr.mxu0 0.0
  %484 = vmatpush1.msra.mxu0 0.0
  %485 = vmatprep.subr.mxu0 0.0
  %486 = vmatpush1.msra.mxu0 0.0
  %487 = vmatprep.subr.mxu0 0.0
  %488 = vmatpush1.msra.mxu0 0.0
  %489 = vmatprep.subr.mxu0 0.0
  %490 = vmatpush1.msra.mxu0 0.0
  %491 = vmatprep.subr.mxu0 0.0
  %492 = vmatpush1.msra.mxu0 0.0
  %493 = vmatprep.subr.mxu0 0.0
  %494 = vmatpush1.msra.mxu0 0.0
  %495 = vmatprep.subr.mxu0 0.0
  %496 = vmatpush1.msra.mxu0 0.0
  %497 = vmatprep.subr.mxu0 0.0
  %498 = vmatpush1.msra.mxu0 0.0
  %499 = vmatprep.subr.mxu0 0.0
  %500 = vmatpush1.msra.mxu0 0.0
  %501 = vmatprep.subr.mxu0 0.0
  %502 = vmatpush1.msra.mxu0 0.0
  %503 = vmatprep.subr.mxu0 0.0
  %504 = vmatpush1.msra.mxu0 0.0
  %505 = vmatprep.subr.mxu0 0.0
  %506 = vmatpush1.msra.mxu0 0.0
  %507 = vmatprep.subr.mxu0 0.0
  %508 = vmatpush1.msra.mxu0 0.0
  %509 = vmatprep.subr.mxu0 0.0
  %510 = vmatpush1.msra.mxu0 0.0
  %511 = vmatprep.subr.mxu0 0.0
  %512 = vmatpush1.msra.mxu0 0.0
  %513 = vmatprep.subr.mxu0 0.0
  %514 = vmatpush1.msra.mxu0 0.0
  %515 = vmatprep.subr.mxu0 0.0
  %516 = vmatpush1.msra.mxu0 0.0
  %517 = vmatprep.subr.mxu0 0.0
  %518 = vmatpush1.msra.mxu0 0.0
  %519 = vmatprep.subr.mxu0 0.0
  %520 = vmatpush1.msra.mxu0 0.0
  %521 = vmatprep.subr.mxu0 0.0
  %522 = vmatpush1.msra.mxu0 0.0
  %523 = vmatprep.subr.mxu0 0.0
  %524 = vmatpush1.msra.mxu0 0.0
  %525 = vmatprep.subr.mxu0 0.0
  %526 = vmatpush1.msra.mxu0 0.0
  %527 = vmatprep.subr.mxu0 0.0
  %528 = vmatpush1.msra.mxu0 0.0
  %529 = vmatprep.mubr.f32.mxu0 0.0
  %530 = vmatmul.mubr.f32.gmra.mrb[0].mxu0 %v463
  %v531 = vpop.f32.mrb[0].mxu0
  %v532 = vadd.f32 %v33, %v531
  %v533 = vpop.f32.mrb[0].mxu0
  %534 = vdwg.mxu0
  %v535 = vadd.f32 %v462, %v532
  %v536 = vxor.u32 %v535, 2147483648
  %v537 = vmul.f32 %v536, 1.442695
  %v538 = vpow.pop %v537
  %v539 = vadd.f32 %v538, 1.0
  %v540 = vrcp.pop %v539
  %v541 = vmul.f32 1.0, %v540
  %543 = vrot.lane.b32.xlu0 %v532, 64
  %v544 = vpop.permute.xlu0 %543
  %v546 = vmul.f32 %v541, %v544
  %548 = vrot.lane.b32.xlu0 %v546, 64
  %v549 = vpop.permute.xlu0 %548
  %v551 = vadd.f32 %v462, %v549
  %v552 = vtanh.pop %v551
  %v553 = vsub.f32 1.0, %v541
  %555 = vrot.lane.b32.xlu0 %v552, 96
  %v556 = vpop.permute.xlu0 %555
  %v558 = vmul.f32 %v553, %v556
  %v559 = vmul.f32 %v541, %v454
  %v560 = vadd.f32 %v558, %v559
  %562 = vrot.lane.b32.xlu0 %v560, 96
  %v563 = vpop.permute.xlu0 %562
  %s565 = scalar_lea.vmem %s3, 32
  %566 = vst.msk [vmem:[%s565] sm:$0xff] %vm35, %v563
  %s567 = scalar_lea.vmem %s0, 40
  %v568 = vld [vmem:[%s567] sm:$0xff]
  %v569 = vsel %vm35, %v563, 0
  %571 = vmatprep.subr.mxu0 0.0
  %572 = vmatpush1.msra.mxu0 %v22
  %573 = vmatprep.subr.mxu0 0.0
  %574 = vmatpush1.msra.mxu0 %v23
  %575 = vmatprep.subr.mxu0 0.0
  %576 = vmatpush1.msra.mxu0 %v24
  %577 = vmatprep.subr.mxu0 0.0
  %578 = vmatpush1.msra.mxu0 %v25
  %579 = vmatprep.subr.mxu0 0.0
  %580 = vmatpush1.msra.mxu0 0.0
  %581 = vmatprep.subr.mxu0 0.0
  %582 = vmatpush1.msra.mxu0 0.0
  %583 = vmatprep.subr.mxu0 0.0
  %584 = vmatpush1.msra.mxu0 0.0
  %585 = vmatprep.subr.mxu0 0.0
  %586 = vmatpush1.msra.mxu0 0.0
  %587 = vmatprep.subr.mxu0 0.0
  %588 = vmatpush1.msra.mxu0 0.0
  %589 = vmatprep.subr.mxu0 0.0
  %590 = vmatpush1.msra.mxu0 0.0
  %591 = vmatprep.subr.mxu0 0.0
  %592 = vmatpush1.msra.mxu0 0.0
  %593 = vmatprep.subr.mxu0 0.0
  %594 = vmatpush1.msra.mxu0 0.0
  %595 = vmatprep.subr.mxu0 0.0
  %596 = vmatpush1.msra.mxu0 0.0
  %597 = vmatprep.subr.mxu0 0.0
  %598 = vmatpush1.msra.mxu0 0.0
  %599 = vmatprep.subr.mxu0 0.0
  %600 = vmatpush1.msra.mxu0 0.0
  %601 = vmatprep.subr.mxu0 0.0
  %602 = vmatpush1.msra.mxu0 0.0
  %603 = vmatprep.subr.mxu0 0.0
  %604 = vmatpush1.msra.mxu0 0.0
  %605 = vmatprep.subr.mxu0 0.0
  %606 = vmatpush1.msra.mxu0 0.0
  %607 = vmatprep.subr.mxu0 0.0
  %608 = vmatpush1.msra.mxu0 0.0
  %609 = vmatprep.subr.mxu0 0.0
  %610 = vmatpush1.msra.mxu0 0.0
  %611 = vmatprep.subr.mxu0 0.0
  %612 = vmatpush1.msra.mxu0 0.0
  %613 = vmatprep.subr.mxu0 0.0
  %614 = vmatpush1.msra.mxu0 0.0
  %615 = vmatprep.subr.mxu0 0.0
  %616 = vmatpush1.msra.mxu0 0.0
  %617 = vmatprep.subr.mxu0 0.0
  %618 = vmatpush1.msra.mxu0 0.0
  %619 = vmatprep.subr.mxu0 0.0
  %620 = vmatpush1.msra.mxu0 0.0
  %621 = vmatprep.subr.mxu0 0.0
  %622 = vmatpush1.msra.mxu0 0.0
  %623 = vmatprep.subr.mxu0 0.0
  %624 = vmatpush1.msra.mxu0 0.0
  %625 = vmatprep.subr.mxu0 0.0
  %626 = vmatpush1.msra.mxu0 0.0
  %627 = vmatprep.subr.mxu0 0.0
  %628 = vmatpush1.msra.mxu0 0.0
  %629 = vmatprep.subr.mxu0 0.0
  %630 = vmatpush1.msra.mxu0 0.0
  %631 = vmatprep.subr.mxu0 0.0
  %632 = vmatpush1.msra.mxu0 0.0
  %633 = vmatprep.subr.mxu0 0.0
  %634 = vmatpush1.msra.mxu0 0.0
  %635 = vmatprep.mubr.f32.mxu0 0.0
  %636 = vmatmul.mubr.f32.gmra.mrb[0].mxu0 %v569
  %v637 = vpop.f32.mrb[0].mxu0
  %v638 = vadd.f32 %v33, %v637
  %v639 = vpop.f32.mrb[0].mxu0
  %640 = vdwg.mxu0
  %v641 = vadd.f32 %v568, %v638
  %v642 = vxor.u32 %v641, 2147483648
  %v643 = vmul.f32 %v642, 1.442695
  %v644 = vpow.pop %v643
  %v645 = vadd.f32 %v644, 1.0
  %v646 = vrcp.pop %v645
  %v647 = vmul.f32 1.0, %v646
  %649 = vrot.lane.b32.xlu0 %v638, 64
  %v650 = vpop.permute.xlu0 %649
  %v652 = vmul.f32 %v647, %v650
  %654 = vrot.lane.b32.xlu0 %v652, 64
  %v655 = vpop.permute.xlu0 %654
  %v657 = vadd.f32 %v568, %v655
  %v658 = vtanh.pop %v657
  %v659 = vsub.f32 1.0, %v647
  %661 = vrot.lane.b32.xlu0 %v658, 96
  %v662 = vpop.permute.xlu0 %661
  %v664 = vmul.f32 %v659, %v662
  %v665 = vmul.f32 %v647, %v560
  %v666 = vadd.f32 %v664, %v665
  %668 = vrot.lane.b32.xlu0 %v666, 96
  %v669 = vpop.permute.xlu0 %668
  %s671 = scalar_lea.vmem %s3, 40
  %672 = vst.msk [vmem:[%s671] sm:$0xff] %vm35, %v669
  %s673 = scalar_lea.vmem %s0, 48
  %v674 = vld [vmem:[%s673] sm:$0xff]
  %v675 = vsel %vm35, %v669, 0
  %677 = vmatprep.subr.mxu0 0.0
  %678 = vmatpush1.msra.mxu0 %v22
  %679 = vmatprep.subr.mxu0 0.0
  %680 = vmatpush1.msra.mxu0 %v23
  %681 = vmatprep.subr.mxu0 0.0
  %682 = vmatpush1.msra.mxu0 %v24
  %683 = vmatprep.subr.mxu0 0.0
  %684 = vmatpush1.msra.mxu0 %v25
  %685 = vmatprep.subr.mxu0 0.0
  %686 = vmatpush1.msra.mxu0 0.0
  %687 = vmatprep.subr.mxu0 0.0
  %688 = vmatpush1.msra.mxu0 0.0
  %689 = vmatprep.subr.mxu0 0.0
  %690 = vmatpush1.msra.mxu0 0.0
  %691 = vmatprep.subr.mxu0 0.0
  %692 = vmatpush1.msra.mxu0 0.0
  %693 = vmatprep.subr.mxu0 0.0
  %694 = vmatpush1.msra.mxu0 0.0
  %695 = vmatprep.subr.mxu0 0.0
  %696 = vmatpush1.msra.mxu0 0.0
  %697 = vmatprep.subr.mxu0 0.0
  %698 = vmatpush1.msra.mxu0 0.0
  %699 = vmatprep.subr.mxu0 0.0
  %700 = vmatpush1.msra.mxu0 0.0
  %701 = vmatprep.subr.mxu0 0.0
  %702 = vmatpush1.msra.mxu0 0.0
  %703 = vmatprep.subr.mxu0 0.0
  %704 = vmatpush1.msra.mxu0 0.0
  %705 = vmatprep.subr.mxu0 0.0
  %706 = vmatpush1.msra.mxu0 0.0
  %707 = vmatprep.subr.mxu0 0.0
  %708 = vmatpush1.msra.mxu0 0.0
  %709 = vmatprep.subr.mxu0 0.0
  %710 = vmatpush1.msra.mxu0 0.0
  %711 = vmatprep.subr.mxu0 0.0
  %712 = vmatpush1.msra.mxu0 0.0
  %713 = vmatprep.subr.mxu0 0.0
  %714 = vmatpush1.msra.mxu0 0.0
  %715 = vmatprep.subr.mxu0 0.0
  %716 = vmatpush1.msra.mxu0 0.0
  %717 = vmatprep.subr.mxu0 0.0
  %718 = vmatpush1.msra.mxu0 0.0
  %719 = vmatprep.subr.mxu0 0.0
  %720 = vmatpush1.msra.mxu0 0.0
  %721 = vmatprep.subr.mxu0 0.0
  %722 = vmatpush1.msra.mxu0 0.0
  %723 = vmatprep.subr.mxu0 0.0
  %724 = vmatpush1.msra.mxu0 0.0
  %725 = vmatprep.subr.mxu0 0.0
  %726 = vmatpush1.msra.mxu0 0.0
  %727 = vmatprep.subr.mxu0 0.0
  %728 = vmatpush1.msra.mxu0 0.0
  %729 = vmatprep.subr.mxu0 0.0
  %730 = vmatpush1.msra.mxu0 0.0
  %731 = vmatprep.subr.mxu0 0.0
  %732 = vmatpush1.msra.mxu0 0.0
  %733 = vmatprep.subr.mxu0 0.0
  %734 = vmatpush1.msra.mxu0 0.0
  %735 = vmatprep.subr.mxu0 0.0
  %736 = vmatpush1.msra.mxu0 0.0
  %737 = vmatprep.subr.mxu0 0.0
  %738 = vmatpush1.msra.mxu0 0.0
  %739 = vmatprep.subr.mxu0 0.0
  %740 = vmatpush1.msra.mxu0 0.0
  %741 = vmatprep.mubr.f32.mxu0 0.0
  %742 = vmatmul.mubr.f32.gmra.mrb[0].mxu0 %v675
  %v743 = vpop.f32.mrb[0].mxu0
  %v744 = vadd.f32 %v33, %v743
  %v745 = vpop.f32.mrb[0].mxu0
  %746 = vdwg.mxu0
  %v747 = vadd.f32 %v674, %v744
  %v748 = vxor.u32 %v747, 2147483648
  %v749 = vmul.f32 %v748, 1.442695
  %v750 = vpow.pop %v749
  %v751 = vadd.f32 %v750, 1.0
  %v752 = vrcp.pop %v751
  %v753 = vmul.f32 1.0, %v752
  %755 = vrot.lane.b32.xlu0 %v744, 64
  %v756 = vpop.permute.xlu0 %755
  %v758 = vmul.f32 %v753, %v756
  %760 = vrot.lane.b32.xlu0 %v758, 64
  %v761 = vpop.permute.xlu0 %760
  %v763 = vadd.f32 %v674, %v761
  %v764 = vtanh.pop %v763
  %v765 = vsub.f32 1.0, %v753
  %767 = vrot.lane.b32.xlu0 %v764, 96
  %v768 = vpop.permute.xlu0 %767
  %v770 = vmul.f32 %v765, %v768
  %v771 = vmul.f32 %v753, %v666
  %v772 = vadd.f32 %v770, %v771
  %774 = vrot.lane.b32.xlu0 %v772, 96
  %v775 = vpop.permute.xlu0 %774
  %s777 = scalar_lea.vmem %s3, 48
  %778 = vst.msk [vmem:[%s777] sm:$0xff] %vm35, %v775
  %s779 = scalar_lea.vmem %s0, 56
  %v780 = vld [vmem:[%s779] sm:$0xff]
  %v781 = vsel %vm35, %v775, 0
  %783 = vmatprep.subr.mxu0 0.0
  %784 = vmatpush1.msra.mxu0 %v22
  %785 = vmatprep.subr.mxu0 0.0
  %786 = vmatpush1.msra.mxu0 %v23
  %787 = vmatprep.subr.mxu0 0.0
  %788 = vmatpush1.msra.mxu0 %v24
  %789 = vmatprep.subr.mxu0 0.0
  %790 = vmatpush1.msra.mxu0 %v25
  %791 = vmatprep.subr.mxu0 0.0
  %792 = vmatpush1.msra.mxu0 0.0
  %793 = vmatprep.subr.mxu0 0.0
  %794 = vmatpush1.msra.mxu0 0.0
  %795 = vmatprep.subr.mxu0 0.0
  %796 = vmatpush1.msra.mxu0 0.0
  %797 = vmatprep.subr.mxu0 0.0
  %798 = vmatpush1.msra.mxu0 0.0
  %799 = vmatprep.subr.mxu0 0.0
  %800 = vmatpush1.msra.mxu0 0.0
  %801 = vmatprep.subr.mxu0 0.0
  %802 = vmatpush1.msra.mxu0 0.0
  %803 = vmatprep.subr.mxu0 0.0
  %804 = vmatpush1.msra.mxu0 0.0
  %805 = vmatprep.subr.mxu0 0.0
  %806 = vmatpush1.msra.mxu0 0.0
  %807 = vmatprep.subr.mxu0 0.0
  %808 = vmatpush1.msra.mxu0 0.0
  %809 = vmatprep.subr.mxu0 0.0
  %810 = vmatpush1.msra.mxu0 0.0
  %811 = vmatprep.subr.mxu0 0.0
  %812 = vmatpush1.msra.mxu0 0.0
  %813 = vmatprep.subr.mxu0 0.0
  %814 = vmatpush1.msra.mxu0 0.0
  %815 = vmatprep.subr.mxu0 0.0
  %816 = vmatpush1.msra.mxu0 0.0
  %817 = vmatprep.subr.mxu0 0.0
  %818 = vmatpush1.msra.mxu0 0.0
  %819 = vmatprep.subr.mxu0 0.0
  %820 = vmatpush1.msra.mxu0 0.0
  %821 = vmatprep.subr.mxu0 0.0
  %822 = vmatpush1.msra.mxu0 0.0
  %823 = vmatprep.subr.mxu0 0.0
  %824 = vmatpush1.msra.mxu0 0.0
  %825 = vmatprep.subr.mxu0 0.0
  %826 = vmatpush1.msra.mxu0 0.0
  %827 = vmatprep.subr.mxu0 0.0
  %828 = vmatpush1.msra.mxu0 0.0
  %829 = vmatprep.subr.mxu0 0.0
  %830 = vmatpush1.msra.mxu0 0.0
  %831 = vmatprep.subr.mxu0 0.0
  %832 = vmatpush1.msra.mxu0 0.0
  %833 = vmatprep.subr.mxu0 0.0
  %834 = vmatpush1.msra.mxu0 0.0
  %835 = vmatprep.subr.mxu0 0.0
  %836 = vmatpush1.msra.mxu0 0.0
  %837 = vmatprep.subr.mxu0 0.0
  %838 = vmatpush1.msra.mxu0 0.0
  %839 = vmatprep.subr.mxu0 0.0
  %840 = vmatpush1.msra.mxu0 0.0
  %841 = vmatprep.subr.mxu0 0.0
  %842 = vmatpush1.msra.mxu0 0.0
  %843 = vmatprep.subr.mxu0 0.0
  %844 = vmatpush1.msra.mxu0 0.0
  %845 = vmatprep.subr.mxu0 0.0
  %846 = vmatpush1.msra.mxu0 0.0
  %847 = vmatprep.mubr.f32.mxu0 0.0
  %848 = vmatmul.mubr.f32.gmra.mrb[0].mxu0 %v781
  %v849 = vpop.f32.mrb[0].mxu0
  %v850 = vadd.f32 %v33, %v849
  %v851 = vpop.f32.mrb[0].mxu0
  %852 = vdwg.mxu0
  %v853 = vadd.f32 %v780, %v850
  %v854 = vxor.u32 %v853, 2147483648
  %v855 = vmul.f32 %v854, 1.442695
  %v856 = vpow.pop %v855
  %v857 = vadd.f32 %v856, 1.0
  %v858 = vrcp.pop %v857
  %v859 = vmul.f32 1.0, %v858
  %861 = vrot.lane.b32.xlu0 %v850, 64
  %v862 = vpop.permute.xlu0 %861
  %v864 = vmul.f32 %v859, %v862
  %866 = vrot.lane.b32.xlu0 %v864, 64
  %v867 = vpop.permute.xlu0 %866
  %v869 = vadd.f32 %v780, %v867
  %v870 = vtanh.pop %v869
  %v871 = vsub.f32 1.0, %v859
  %873 = vrot.lane.b32.xlu0 %v870, 96
  %v874 = vpop.permute.xlu0 %873
  %v876 = vmul.f32 %v871, %v874
  %v877 = vmul.f32 %v859, %v772
  %v878 = vadd.f32 %v876, %v877
  %880 = vrot.lane.b32.xlu0 %v878, 96
  %v881 = vpop.permute.xlu0 %880
  %s883 = scalar_lea.vmem %s3, 56
  %884 = vst.msk [vmem:[%s883] sm:$0xff] %vm35, %v881
  %885 = vst.msk [vmem:[#allocation2] sm:$0xff] %vm35, %v881
  // Predicated region
  $region18: #{linear_rnn_base_forward.3} parent=0 // pred_check
    %p886 = pneg %p16
  $region19: #{linear_rnn_base_forward.3} parent=0 // pred_check_branch
    %888 = sbr.rel (%p886) target = $region21
  $region20: #{linear_rnn_base_forward.3} parent=0 // pred_region
    %889 = vst.msk [vmem:[%s4] sm:$0xff] %vm35, %v881
  $region21: #{linear_rnn_base_forward.3} parent=0 // pred_fallthru
    _
  // Predicated region
  $region22: #{linear_rnn_base_forward.3} parent=0 // pred_check
    _
  $region23: #{linear_rnn_base_forward.3} parent=0 // pred_check_branch
    %891 = sbr.rel (0) target = $region25
  $region24: #{linear_rnn_base_forward.3} parent=0 // pred_region
    _
  $region25: #{linear_rnn_base_forward.3} parent=0 // pred_fallthru
    _
  // Predicated region
  $region26: #{linear_rnn_base_forward.3} parent=0 // pred_check
    _
  $region27: #{linear_rnn_base_forward.3} parent=0 // pred_check_branch
    %893 = sbr.rel (0) target = $region29
  $region28: #{linear_rnn_base_forward.3} parent=0 // pred_region
    _
  $region29: #{linear_rnn_base_forward.3} parent=0 // pred_fallthru
    _
  // Predicated region
  $region30: #{linear_rnn_base_forward.3} parent=0 // pred_check
    _
  $region31: #{linear_rnn_base_forward.3} parent=0 // pred_check_branch
    %895 = sbr.rel (0) target = $region33
  $region32: #{linear_rnn_base_forward.3} parent=0 // pred_region
    _
  $region33: #{linear_rnn_base_forward.3} parent=0 // pred_fallthru
    _
  // Predicated region
  $region34: #{linear_rnn_base_forward.3} parent=0 // pred_check
    _
  $region35: #{linear_rnn_base_forward.3} parent=0 // pred_check_branch
    %897 = sbr.rel (0) target = $region37
  $region36: #{linear_rnn_base_forward.3} parent=0 // pred_region
    _
  $region37: #{linear_rnn_base_forward.3} parent=0 // pred_fallthru
    _

</llo_original>
